<compile_context>
chip_gen: v7x
topology: tpu7x:2x2x1
jax: 0.10.0
libtpu: 0.0.40
codegen_flags: <defaults>
</compile_context>

<pallas_src>
import jax
import jax.numpy as jnp
from jax import lax
from jax.experimental import pallas as pl
from jax.experimental.pallas import tpu as pltpu

B = 2                 # batch
T = 1                 # query context length (single decode step, loop=True)
TC = 16               # self-attention KV cache length
TC_NEW = TC - 1 + T   # cache length after shift-and-append (== TC when T == 1)
TX = 8                # cross-attention (audio) context length
D = 32                # n_state
H = 4                 # n_head
HD = D // H           # head dim
D4 = 4 * D            # MLP hidden
EPS = 1e-5            # LayerNorm eps (PyTorch default)

# row offsets inside the packed bf16 weight slab (224 rows x 128 lanes)
_R_QKV = 0            # (D, 3D) [wq*scale | wk | wv | pad]
_R_W1 = D             # (D, 4D)
_R_OQO = 2 * D        # (D, 3D) [wo | cwq*scale | cwo | pad]
_R_W2 = 3 * D         # (4D, D) (native orientation, lanes 0:D)
W_ROWS = 3 * D + D4   # 224


def _block_kernel(x_ref, kc_ref, vc_ref, ck_ref, cv_ref, mask_ref,
                  w_ref, v_ref, xo_ref, kco_ref, vco_ref):
    w = w_ref[...]                       # (224, 128) bf16 — all matmul weights
    vs = v_ref[...]                      # (24, 128)  f32  — gains / biases / masks
    vec = vs[0:16, 0:D]                  # (16, D)
    aln_g, aln_b = vec[0:1], vec[1:2]
    bq, bv, bo = vec[2:3], vec[3:4], vec[4:5]        # bq already pre-scaled
    cln_g, cln_b = vec[5:6], vec[6:7]
    cbq, cbo = vec[7:8], vec[8:9]                    # cbq already pre-scaled
    mln_g, mln_b = vec[9:10], vec[10:11]
    b2 = vec[11:12]
    head_mask = vec[12:12 + H]           # (H, D) block-diagonal head selector (0/1)
    b1 = vs[16:17, :]                    # (1, D4)

    x = x_ref[...].reshape(B * T, D)     # (B, D)   (T == 1)

    def layer_norm(t, g, b):
        mu = jnp.mean(t, axis=-1, keepdims=True)
        var = jnp.mean((t - mu) ** 2, axis=-1, keepdims=True)
        return (t - mu) * lax.rsqrt(var + EPS) * g + b

    def mm(a, w_blk):                    # f32 activations x bf16 weights -> f32 acc
        return jnp.dot(a.astype(jnp.bfloat16), w_blk,
                       preferred_element_type=jnp.float32)

    def mha(q2, kf, vf, mask):
        # q2: (B, D) pre-scaled query rows (scale folded into weights at pack
        # time); kf/vf: (B, S, D) f32. One batched block-diagonal score matmul
        # per attention — no per-head loop.
        q_blk = q2[:, None, :] * head_mask[None]                  # (B, H, D)
        s = jnp.einsum('bhd,bsd->bhs', q_blk, kf,
                       preferred_element_type=jnp.float32)        # (B, H, S)
        if mask is not None:
            s = s + mask
        s = s - jnp.max(s, axis=-1, keepdims=True)
        e = jnp.exp(s)
        p = e * pl.reciprocal(jnp.sum(e, axis=-1, keepdims=True), approx=True)
        o = jnp.einsum('bhs,bsd->bhd', p, vf,
                       preferred_element_type=jnp.float32)        # (B, H, D)
        return jnp.sum(o * head_mask[None], axis=1)               # (B, D)

    # ---- self attention (loop=True decode step over the tensor cache) ----
    y = layer_norm(x, aln_g, aln_b)
    qkv = mm(y, w[_R_QKV:_R_QKV + D, :])          # (B, 128): [q | k | v | pad]
    q = qkv[:, 0:D] + bq
    k_new = qkv[:, D:2 * D]                       # key projection has no bias
    v_new = qkv[:, 2 * D:3 * D] + bv

    # shift-and-append the KV tensor cache: one sublane roll on the flattened
    # (B*TC, D) cache + one select. The single row that wraps across the batch
    # boundary is exactly the row overwritten by the freshly appended k/v.
    last_row = lax.broadcasted_iota(jnp.int32, (TC, D), 0) == TC - 1

    def shift_append(cache_ref, new_row):
        rolled = pltpu.roll(cache_ref[...].reshape(B * TC, D),
                            shift=B * TC - 1, axis=0).reshape(B, TC, D)
        return jnp.where(last_row, new_row[:, None, :], rolled)

    k_full = shift_append(kc_ref, k_new)          # (B, TC, D) — used as values,
    v_full = shift_append(vc_ref, v_new)          # not re-read from the outputs
    kco_ref[...] = k_full                         # cache writeback overlaps with
    vco_ref[...] = v_full                         # the score matmuls below

    wv = mha(q, k_full, v_full, mask_ref[...])
    x = x + mm(wv, w[_R_OQO:_R_OQO + D, 0:D]) + bo

    # ---- cross attention (cross_k / cross_v are precomputed projections) ----
    y = layer_norm(x, cln_g, cln_b)
    qc = mm(y, w[_R_OQO:_R_OQO + D, D:2 * D]) + cbq
    wvc = mha(qc, ck_ref[...], cv_ref[...], None)
    x = x + mm(wvc, w[_R_OQO:_R_OQO + D, 2 * D:3 * D]) + cbo

    # ---- MLP (exact erf-GELU, matching torch.nn.GELU()) ----
    y = layer_norm(x, mln_g, mln_b)
    h1 = mm(y, w[_R_W1:_R_W1 + D, :]) + b1
    h1 = 0.5 * h1 * (1.0 + lax.erf(h1 * (2.0 ** -0.5)))
    x = x + mm(h1, w[_R_W2:_R_W2 + D4, 0:D]) + b2

    xo_ref[...] = x.reshape(B, T, D)


def pack_params(p):
    """ONE-TIME (init-side) packing of the 21 module parameters into
    (a) one bf16 matmul-weight slab and (b) one f32 gains/biases/mask slab.
    Do NOT call this per decode step — cache the result."""
    s = float(HD) ** -0.5                                   # attention scale -> q weights
    zD = jnp.zeros((D, D), jnp.float32)
    w_qkv = jnp.concatenate([p["wq"] * s, p["wk"], p["wv"], zD], axis=1)     # (D, 128)
    w_oqo = jnp.concatenate([p["wo"], p["cwq"] * s, p["cwo"], zD], axis=1)   # (D, 128)
    w2 = jnp.concatenate([p["w2"], jnp.zeros((D4, 128 - D), jnp.float32)], axis=1)  # (D4, 128)
    w_slab = jnp.concatenate([w_qkv, p["w1"], w_oqo, w2], axis=0).astype(jnp.bfloat16)  # (224, 128)

    col_head = lax.broadcasted_iota(jnp.int32, (H, D), 1) // HD
    row_head = lax.broadcasted_iota(jnp.int32, (H, D), 0)
    head_mask = (col_head == row_head).astype(jnp.float32)                   # (H, D)
    vec = jnp.concatenate([p["aln_g"], p["aln_b"], p["bq"] * s, p["bv"], p["bo"],
                           p["cln_g"], p["cln_b"], p["cbq"] * s, p["cbo"],
                           p["mln_g"], p["mln_b"], p["b2"], head_mask], axis=0)   # (16, D)
    vec = jnp.concatenate([vec, jnp.zeros((16, 128 - D), jnp.float32)], axis=1)   # (16, 128)
    b1 = jnp.concatenate([p["b1"], jnp.zeros((7, 128), jnp.float32)], axis=0)     # (8, 128)
    v_slab = jnp.concatenate([vec, b1], axis=0)                                    # (24, 128)
    return w_slab, v_slab


@jax.jit
def residual_attention_block(x, self_k_cache, self_v_cache, cross_k, cross_v,
                             mask, w_slab, v_slab):
    """One decode step (loop=True). x / self_k_cache / self_v_cache are aliased
    with the outputs — do not reuse the originals after the call."""
    assert T == 1 and TC_NEW == TC
    vmem = pl.BlockSpec(memory_space=pltpu.MemorySpace.VMEM)
    out_shape = (jax.ShapeDtypeStruct((B, T, D), jnp.float32),
                 jax.ShapeDtypeStruct((B, TC_NEW, D), jnp.float32),
                 jax.ShapeDtypeStruct((B, TC_NEW, D), jnp.float32))
    # single invocation, no grid: the whole problem (<100 KB) is VMEM-resident.
    # For multi-layer decode, grid over layers with stacked (L, ...) weight
    # slabs and a layer-indexed BlockSpec, keeping x / caches VMEM-resident.
    return pl.pallas_call(
        _block_kernel,
        out_shape=out_shape,
        in_specs=[vmem] * 8,
        out_specs=(vmem, vmem, vmem),
        input_output_aliases={0: 0, 1: 1, 2: 2},   # x, k_cache, v_cache writeback
    )(x, self_k_cache, self_v_cache, cross_k, cross_v, mask, w_slab, v_slab)


def reference(x, kc, vc, ck, cv, mask, p):
    # pure-JAX mirror of the PyTorch forward (loop=True), f32 throughout
    def ln(t, g, b):
        mu = t.mean(-1, keepdims=True)
        var = ((t - mu) ** 2).mean(-1, keepdims=True)
        return (t - mu) / jnp.sqrt(var + EPS) * g + b

    def mha(q, k, v, m):
        Bq, Tq, Dq = q.shape
        S = k.shape[1]
        scale = float(HD) ** -0.25
        qh = q.reshape(Bq, Tq, H, HD).transpose(0, 2, 1, 3) * scale
        kh = k.reshape(Bq, S, H, HD).transpose(0, 2, 3, 1) * scale
        vh = v.reshape(Bq, S, H, HD).transpose(0, 2, 1, 3)
        qk = qh @ kh
        if m is not None:
            qk = qk + m
        w = jax.nn.softmax(qk, axis=-1)
        return (w @ vh).transpose(0, 2, 1, 3).reshape(Bq, Tq, Dq)

    gelu = lambda t: 0.5 * t * (1.0 + lax.erf(t / jnp.sqrt(2.0)))

    y = ln(x, p["aln_g"][0], p["aln_b"][0])
    q = y @ p["wq"] + p["bq"][0]
    k = y @ p["wk"]
    v = y @ p["wv"] + p["bv"][0]
    kc_n = jnp.concatenate([kc[:, 1:, :], k], axis=1)
    vc_n = jnp.concatenate([vc[:, 1:, :], v], axis=1)
    x = x + (mha(q, kc_n, vc_n, mask) @ p["wo"] + p["bo"][0])
    y = ln(x, p["cln_g"][0], p["cln_b"][0])
    q = y @ p["cwq"] + p["cbq"][0]
    x = x + (mha(q, ck, cv, None) @ p["cwo"] + p["cbo"][0])
    y = ln(x, p["mln_g"][0], p["mln_b"][0])
    x = x + (gelu(y @ p["w1"] + p["b1"][0]) @ p["w2"] + p["b2"][0])
    return x, kc_n, vc_n


if __name__ == "__main__":
    key = jax.random.PRNGKey(0)
    keys = iter(jax.random.split(key, 32))

    def nrm(shape, s=0.02):
        return jax.random.normal(next(keys), shape, jnp.float32) * s

    params = dict(
        aln_g=1.0 + nrm((1, D), 0.1), aln_b=nrm((1, D), 0.1),
        wq=nrm((D, D)), bq=nrm((1, D)),
        wk=nrm((D, D)),
        wv=nrm((D, D)), bv=nrm((1, D)),
        wo=nrm((D, D)), bo=nrm((1, D)),
        cln_g=1.0 + nrm((1, D), 0.1), cln_b=nrm((1, D), 0.1),
        cwq=nrm((D, D)), cbq=nrm((1, D)),
        cwo=nrm((D, D)), cbo=nrm((1, D)),
        mln_g=1.0 + nrm((1, D), 0.1), mln_b=nrm((1, D), 0.1),
        w1=nrm((D, D4)), b1=nrm((1, D4)),
        w2=nrm((D4, D)), b2=nrm((1, D)),
    )

    # one-time packing (model init), NOT part of the per-step path
    w_slab, v_slab = pack_params(params)
    w_slab, v_slab = jax.block_until_ready((w_slab, v_slab))

    x = nrm((B, T, D), 1.0)
    self_k_cache = nrm((B, TC, D), 1.0)
    self_v_cache = nrm((B, TC, D), 1.0)
    cross_k = nrm((B, TX, D), 1.0)
    cross_v = nrm((B, TX, D), 1.0)
    # mask: pretend the first 4 cache slots are still empty -> masked out
    mask = jnp.where(jnp.arange(TC_NEW)[None, :] < 4, -1e9, 0.0).astype(jnp.float32)
    mask = jnp.broadcast_to(mask, (T, TC_NEW))

    ref = reference(x, self_k_cache, self_v_cache, cross_k, cross_v, mask, params)

    out = residual_attention_block(x, self_k_cache, self_v_cache,
                                   cross_k, cross_v, mask, w_slab, v_slab)
    out = jax.block_until_ready(out)

    # bf16 weights + approx-reciprocal softmax: allow ~3e-3 (f32 reference)
    for o, r in zip(out, ref):
        assert o.shape == r.shape and o.dtype == r.dtype
        assert jnp.allclose(o, r, atol=3e-3, rtol=3e-3), float(jnp.abs(o - r).max())

    print("KERNEL_OK")
</pallas_src>

<mosaic_0001>
module attributes {stable_mosaic.version = 11 : i64} {
  func.func @_block_kernel(%arg0: memref<2x1x32xf32, #tpu.memory_space<vmem>>, %arg1: memref<2x16x32xf32, #tpu.memory_space<vmem>>, %arg2: memref<2x16x32xf32, #tpu.memory_space<vmem>>, %arg3: memref<2x8x32xf32, #tpu.memory_space<vmem>>, %arg4: memref<2x8x32xf32, #tpu.memory_space<vmem>>, %arg5: memref<1x16xf32, #tpu.memory_space<vmem>>, %arg6: memref<224x128xbf16, #tpu.memory_space<vmem>>, %arg7: memref<24x128xf32, #tpu.memory_space<vmem>>, %arg8: memref<2x1x32xf32, #tpu.memory_space<vmem>>, %arg9: memref<2x16x32xf32, #tpu.memory_space<vmem>>, %arg10: memref<2x16x32xf32, #tpu.memory_space<vmem>>) attributes {dimension_semantics = [], scalar_prefetch = 0 : i64, scratch_operands = 0 : i64, tpu.core_type = #tpu.core_type<tc>} {
    %c0 = arith.constant 0 : index
    %c0_0 = arith.constant 0 : index
    %0 = vector.load %arg6[%c0, %c0_0] : memref<224x128xbf16, #tpu.memory_space<vmem>>, vector<224x128xbf16>
    %c0_1 = arith.constant 0 : index
    %c0_2 = arith.constant 0 : index
    %1 = vector.load %arg7[%c0_1, %c0_2] : memref<24x128xf32, #tpu.memory_space<vmem>>, vector<24x128xf32>
    %2 = vector.extract_strided_slice %1 {offsets = [0, 0], sizes = [16, 32], strides = [1, 1]} : vector<24x128xf32> to vector<16x32xf32>
    %3 = vector.extract_strided_slice %2 {offsets = [0, 0], sizes = [1, 32], strides = [1, 1]} : vector<16x32xf32> to vector<1x32xf32>
    %4 = vector.extract_strided_slice %2 {offsets = [1, 0], sizes = [1, 32], strides = [1, 1]} : vector<16x32xf32> to vector<1x32xf32>
    %5 = vector.extract_strided_slice %2 {offsets = [2, 0], sizes = [1, 32], strides = [1, 1]} : vector<16x32xf32> to vector<1x32xf32>
    %6 = vector.extract_strided_slice %2 {offsets = [3, 0], sizes = [1, 32], strides = [1, 1]} : vector<16x32xf32> to vector<1x32xf32>
    %7 = vector.extract_strided_slice %2 {offsets = [4, 0], sizes = [1, 32], strides = [1, 1]} : vector<16x32xf32> to vector<1x32xf32>
    %8 = vector.extract_strided_slice %2 {offsets = [5, 0], sizes = [1, 32], strides = [1, 1]} : vector<16x32xf32> to vector<1x32xf32>
    %9 = vector.extract_strided_slice %2 {offsets = [6, 0], sizes = [1, 32], strides = [1, 1]} : vector<16x32xf32> to vector<1x32xf32>
    %10 = vector.extract_strided_slice %2 {offsets = [7, 0], sizes = [1, 32], strides = [1, 1]} : vector<16x32xf32> to vector<1x32xf32>
    %11 = vector.extract_strided_slice %2 {offsets = [8, 0], sizes = [1, 32], strides = [1, 1]} : vector<16x32xf32> to vector<1x32xf32>
    %12 = vector.extract_strided_slice %2 {offsets = [9, 0], sizes = [1, 32], strides = [1, 1]} : vector<16x32xf32> to vector<1x32xf32>
    %13 = vector.extract_strided_slice %2 {offsets = [10, 0], sizes = [1, 32], strides = [1, 1]} : vector<16x32xf32> to vector<1x32xf32>
    %14 = vector.extract_strided_slice %2 {offsets = [11, 0], sizes = [1, 32], strides = [1, 1]} : vector<16x32xf32> to vector<1x32xf32>
    %15 = vector.extract_strided_slice %2 {offsets = [12, 0], sizes = [4, 32], strides = [1, 1]} : vector<16x32xf32> to vector<4x32xf32>
    %16 = vector.extract_strided_slice %1 {offsets = [16, 0], sizes = [1, 128], strides = [1, 1]} : vector<24x128xf32> to vector<1x128xf32>
    %c0_3 = arith.constant 0 : index
    %c0_4 = arith.constant 0 : index
    %c0_5 = arith.constant 0 : index
    %17 = vector.load %arg0[%c0_3, %c0_4, %c0_5] : memref<2x1x32xf32, #tpu.memory_space<vmem>>, vector<2x1x32xf32>
    %18 = vector.shape_cast %17 : vector<2x1x32xf32> to vector<2x32xf32>
    %cst = arith.constant dense<0.000000e+00> : vector<2xf32>
    %19 = vector.multi_reduction <add>, %18, %cst [1] : vector<2x32xf32> to vector<2xf32>
    %20 = vector.shape_cast %19 : vector<2xf32> to vector<2x1xf32>
    %cst_6 = arith.constant 3.200000e+01 : f32
    %21 = vector.broadcast %cst_6 : f32 to vector<2x1xf32>
    %22 = arith.divf %20, %21 : vector<2x1xf32>
    %23 = vector.broadcast %22 : vector<2x1xf32> to vector<2x32xf32>
    %24 = arith.subf %18, %23 : vector<2x32xf32>
    %25 = arith.mulf %24, %24 : vector<2x32xf32>
    %cst_7 = arith.constant dense<0.000000e+00> : vector<2xf32>
    %26 = vector.multi_reduction <add>, %25, %cst_7 [1] : vector<2x32xf32> to vector<2xf32>
    %27 = vector.shape_cast %26 : vector<2xf32> to vector<2x1xf32>
    %cst_8 = arith.constant 3.200000e+01 : f32
    %28 = vector.broadcast %cst_8 : f32 to vector<2x1xf32>
    %29 = arith.divf %27, %28 : vector<2x1xf32>
    %30 = vector.broadcast %22 : vector<2x1xf32> to vector<2x32xf32>
    %31 = arith.subf %18, %30 : vector<2x32xf32>
    %cst_9 = arith.constant 9.99999974E-6 : f32
    %32 = vector.broadcast %cst_9 : f32 to vector<2x1xf32>
    %33 = arith.addf %29, %32 : vector<2x1xf32>
    %34 = math.rsqrt %33 : vector<2x1xf32>
    %35 = vector.broadcast %34 : vector<2x1xf32> to vector<2x32xf32>
    %36 = arith.mulf %31, %35 : vector<2x32xf32>
    %37 = vector.broadcast %3 : vector<1x32xf32> to vector<2x32xf32>
    %38 = arith.mulf %36, %37 : vector<2x32xf32>
    %39 = vector.broadcast %4 : vector<1x32xf32> to vector<2x32xf32>
    %40 = arith.addf %38, %39 : vector<2x32xf32>
    %41 = vector.extract_strided_slice %0 {offsets = [0, 0], sizes = [32, 128], strides = [1, 1]} : vector<224x128xbf16> to vector<32x128xbf16>
    %42 = arith.truncf %40 : vector<2x32xf32> to vector<2x32xbf16>
    %cst_10 = arith.constant dense<0.000000e+00> : vector<2x128xf32>
    %43 = tpu.matmul %42, %41, %cst_10 {dimension_numbers = #tpu.dot_dimension_numbers<[1], [0], [0], [1], [0, 0, 1, 1], [], []>} : vector<2x32xbf16>, vector<32x128xbf16>, vector<2x128xf32> -> vector<2x128xf32>
    %44 = vector.extract_strided_slice %43 {offsets = [0, 0], sizes = [2, 32], strides = [1, 1]} : vector<2x128xf32> to vector<2x32xf32>
    %45 = vector.broadcast %5 : vector<1x32xf32> to vector<2x32xf32>
    %46 = arith.addf %44, %45 : vector<2x32xf32>
    %47 = vector.extract_strided_slice %43 {offsets = [0, 32], sizes = [2, 32], strides = [1, 1]} : vector<2x128xf32> to vector<2x32xf32>
    %48 = vector.extract_strided_slice %43 {offsets = [0, 64], sizes = [2, 32], strides = [1, 1]} : vector<2x128xf32> to vector<2x32xf32>
    %49 = vector.broadcast %6 : vector<1x32xf32> to vector<2x32xf32>
    %50 = arith.addf %48, %49 : vector<2x32xf32>
    %51 = tpu.iota {dimensions = array<i32: 0>} : vector<16x32xi32>
    %c15_i32 = arith.constant 15 : i32
    %52 = vector.broadcast %c15_i32 : i32 to vector<16x32xi32>
    %53 = arith.cmpi eq, %51, %52 : vector<16x32xi32>
    %c0_11 = arith.constant 0 : index
    %c0_12 = arith.constant 0 : index
    %c0_13 = arith.constant 0 : index
    %54 = vector.load %arg1[%c0_11, %c0_12, %c0_13] : memref<2x16x32xf32, #tpu.memory_space<vmem>>, vector<2x16x32xf32>
    %55 = vector.shape_cast %54 : vector<2x16x32xf32> to vector<32x32xf32>
    %c31_i32 = arith.constant 31 : i32
    %56 = tpu.dynamic_rotate %55 by %c31_i32 dim 0 : vector<32x32xf32>, i32 -> vector<32x32xf32>
    %57 = vector.shape_cast %56 : vector<32x32xf32> to vector<2x16x32xf32>
    %58 = vector.shape_cast %47 : vector<2x32xf32> to vector<2x1x32xf32>
    %59 = vector.shape_cast %53 : vector<16x32xi1> to vector<1x16x32xi1>
    %60 = vector.broadcast %59 : vector<1x16x32xi1> to vector<2x16x32xi1>
    %61 = vector.shape_cast %58 : vector<2x1x32xf32> to vector<2x1x32xf32>
    %62 = vector.broadcast %61 : vector<2x1x32xf32> to vector<2x16x32xf32>
    %63 = arith.select %60, %62, %57 : vector<2x16x32xi1>, vector<2x16x32xf32>
    %c0_14 = arith.constant 0 : index
    %c0_15 = arith.constant 0 : index
    %c0_16 = arith.constant 0 : index
    %64 = vector.load %arg2[%c0_14, %c0_15, %c0_16] : memref<2x16x32xf32, #tpu.memory_space<vmem>>, vector<2x16x32xf32>
    %65 = vector.shape_cast %64 : vector<2x16x32xf32> to vector<32x32xf32>
    %c31_i32_17 = arith.constant 31 : i32
    %66 = tpu.dynamic_rotate %65 by %c31_i32_17 dim 0 : vector<32x32xf32>, i32 -> vector<32x32xf32>
    %67 = vector.shape_cast %66 : vector<32x32xf32> to vector<2x16x32xf32>
    %68 = vector.shape_cast %50 : vector<2x32xf32> to vector<2x1x32xf32>
    %69 = vector.shape_cast %53 : vector<16x32xi1> to vector<1x16x32xi1>
    %70 = vector.broadcast %69 : vector<1x16x32xi1> to vector<2x16x32xi1>
    %71 = vector.shape_cast %68 : vector<2x1x32xf32> to vector<2x1x32xf32>
    %72 = vector.broadcast %71 : vector<2x1x32xf32> to vector<2x16x32xf32>
    %73 = arith.select %70, %72, %67 : vector<2x16x32xi1>, vector<2x16x32xf32>
    %c0_18 = arith.constant 0 : index
    %c0_19 = arith.constant 0 : index
    %c0_20 = arith.constant 0 : index
    %74 = vector.load %arg9[%c0_18, %c0_19, %c0_20] : memref<2x16x32xf32, #tpu.memory_space<vmem>>, vector<2x16x32xf32>
    tpu.vector_store %arg9[%c0_18, %c0_19, %c0_20], %63 {strides = array<i32>} : memref<2x16x32xf32, #tpu.memory_space<vmem>>, vector<2x16x32xf32>,
    %c0_21 = arith.constant 0 : index
    %c0_22 = arith.constant 0 : index
    %c0_23 = arith.constant 0 : index
    %75 = vector.load %arg10[%c0_21, %c0_22, %c0_23] : memref<2x16x32xf32, #tpu.memory_space<vmem>>, vector<2x16x32xf32>
    tpu.vector_store %arg10[%c0_21, %c0_22, %c0_23], %73 {strides = array<i32>} : memref<2x16x32xf32, #tpu.memory_space<vmem>>, vector<2x16x32xf32>,
    %c0_24 = arith.constant 0 : index
    %c0_25 = arith.constant 0 : index
    %76 = vector.load %arg5[%c0_24, %c0_25] : memref<1x16xf32, #tpu.memory_space<vmem>>, vector<1x16xf32>
    %77 = vector.shape_cast %46 : vector<2x32xf32> to vector<2x1x32xf32>
    %78 = vector.shape_cast %15 : vector<4x32xf32> to vector<1x4x32xf32>
    %79 = vector.broadcast %77 : vector<2x1x32xf32> to vector<2x4x32xf32>
    %80 = vector.broadcast %78 : vector<1x4x32xf32> to vector<2x4x32xf32>
    %81 = arith.mulf %79, %80 : vector<2x4x32xf32>
    "tpu.trace_start"() <{level = 10 : i32, message = "bhd,bsd->bhs"}> : () -> ()
    %cst_26 = arith.constant dense<0.000000e+00> : vector<2x4x16xf32>
    %82 = tpu.matmul %81, %63, %cst_26 {dimension_numbers = #tpu.dot_dimension_numbers<[2], [2], [1], [1], [0, 0, 0, 1, 1, 1], [0], [0]>} : vector<2x4x32xf32>, vector<2x16x32xf32>, vector<2x4x16xf32> -> vector<2x4x16xf32>
    "tpu.trace_stop"() : () -> ()
    %83 = vector.shape_cast %76 : vector<1x16xf32> to vector<1x1x16xf32>
    %84 = vector.broadcast %83 : vector<1x1x16xf32> to vector<2x4x16xf32>
    %85 = arith.addf %82, %84 : vector<2x4x16xf32>
    %cst_27 = arith.constant dense<0xFF800000> : vector<2x4xf32>
    %86 = vector.multi_reduction <maximumf>, %85, %cst_27 [2] : vector<2x4x16xf32> to vector<2x4xf32>
    %87 = vector.shape_cast %86 : vector<2x4xf32> to vector<2x4x1xf32>
    %88 = vector.broadcast %87 : vector<2x4x1xf32> to vector<2x4x16xf32>
    %89 = arith.subf %85, %88 : vector<2x4x16xf32>
    %90 = math.exp %89 : vector<2x4x16xf32>
    %cst_28 = arith.constant dense<0.000000e+00> : vector<2x4xf32>
    %91 = vector.multi_reduction <add>, %90, %cst_28 [2] : vector<2x4x16xf32> to vector<2x4xf32>
    %92 = vector.shape_cast %91 : vector<2x4xf32> to vector<2x4x1xf32>
    %93 = tpu.reciprocal %92 {approx = true} : vector<2x4x1xf32> -> vector<2x4x1xf32>
    %94 = vector.broadcast %93 : vector<2x4x1xf32> to vector<2x4x16xf32>
    %95 = arith.mulf %90, %94 : vector<2x4x16xf32>
    "tpu.trace_start"() <{level = 10 : i32, message = "bhs,bsd->bhd"}> : () -> ()
    %cst_29 = arith.constant dense<0.000000e+00> : vector<2x4x32xf32>
    %96 = tpu.matmul %95, %73, %cst_29 {dimension_numbers = #tpu.dot_dimension_numbers<[2], [1], [1], [2], [0, 0, 0, 1, 1, 2], [0], [0]>} : vector<2x4x16xf32>, vector<2x16x32xf32>, vector<2x4x32xf32> -> vector<2x4x32xf32>
    "tpu.trace_stop"() : () -> ()
    %97 = vector.shape_cast %15 : vector<4x32xf32> to vector<1x4x32xf32>
    %98 = vector.broadcast %97 : vector<1x4x32xf32> to vector<2x4x32xf32>
    %99 = arith.mulf %96, %98 : vector<2x4x32xf32>
    %cst_30 = arith.constant dense<0.000000e+00> : vector<2x32xf32>
    %100 = vector.multi_reduction <add>, %99, %cst_30 [1] : vector<2x4x32xf32> to vector<2x32xf32>
    %101 = vector.extract_strided_slice %0 {offsets = [64, 0], sizes = [32, 32], strides = [1, 1]} : vector<224x128xbf16> to vector<32x32xbf16>
    %102 = arith.truncf %100 : vector<2x32xf32> to vector<2x32xbf16>
    %cst_31 = arith.constant dense<0.000000e+00> : vector<2x32xf32>
    %103 = tpu.matmul %102, %101, %cst_31 {dimension_numbers = #tpu.dot_dimension_numbers<[1], [0], [0], [1], [0, 0, 1, 1], [], []>} : vector<2x32xbf16>, vector<32x32xbf16>, vector<2x32xf32> -> vector<2x32xf32>
    %104 = arith.addf %18, %103 : vector<2x32xf32>
    %105 = vector.broadcast %7 : vector<1x32xf32> to vector<2x32xf32>
    %106 = arith.addf %104, %105 : vector<2x32xf32>
    %cst_32 = arith.constant dense<0.000000e+00> : vector<2xf32>
    %107 = vector.multi_reduction <add>, %106, %cst_32 [1] : vector<2x32xf32> to vector<2xf32>
    %108 = vector.shape_cast %107 : vector<2xf32> to vector<2x1xf32>
    %cst_33 = arith.constant 3.200000e+01 : f32
    %109 = vector.broadcast %cst_33 : f32 to vector<2x1xf32>
    %110 = arith.divf %108, %109 : vector<2x1xf32>
    %111 = vector.broadcast %110 : vector<2x1xf32> to vector<2x32xf32>
    %112 = arith.subf %106, %111 : vector<2x32xf32>
    %113 = arith.mulf %112, %112 : vector<2x32xf32>
    %cst_34 = arith.constant dense<0.000000e+00> : vector<2xf32>
    %114 = vector.multi_reduction <add>, %113, %cst_34 [1] : vector<2x32xf32> to vector<2xf32>
    %115 = vector.shape_cast %114 : vector<2xf32> to vector<2x1xf32>
    %cst_35 = arith.constant 3.200000e+01 : f32
    %116 = vector.broadcast %cst_35 : f32 to vector<2x1xf32>
    %117 = arith.divf %115, %116 : vector<2x1xf32>
    %118 = vector.broadcast %110 : vector<2x1xf32> to vector<2x32xf32>
    %119 = arith.subf %106, %118 : vector<2x32xf32>
    %cst_36 = arith.constant 9.99999974E-6 : f32
    %120 = vector.broadcast %cst_36 : f32 to vector<2x1xf32>
    %121 = arith.addf %117, %120 : vector<2x1xf32>
    %122 = math.rsqrt %121 : vector<2x1xf32>
    %123 = vector.broadcast %122 : vector<2x1xf32> to vector<2x32xf32>
    %124 = arith.mulf %119, %123 : vector<2x32xf32>
    %125 = vector.broadcast %8 : vector<1x32xf32> to vector<2x32xf32>
    %126 = arith.mulf %124, %125 : vector<2x32xf32>
    %127 = vector.broadcast %9 : vector<1x32xf32> to vector<2x32xf32>
    %128 = arith.addf %126, %127 : vector<2x32xf32>
    %129 = vector.extract_strided_slice %0 {offsets = [64, 32], sizes = [32, 32], strides = [1, 1]} : vector<224x128xbf16> to vector<32x32xbf16>
    %130 = arith.truncf %128 : vector<2x32xf32> to vector<2x32xbf16>
    %cst_37 = arith.constant dense<0.000000e+00> : vector<2x32xf32>
    %131 = tpu.matmul %130, %129, %cst_37 {dimension_numbers = #tpu.dot_dimension_numbers<[1], [0], [0], [1], [0, 0, 1, 1], [], []>} : vector<2x32xbf16>, vector<32x32xbf16>, vector<2x32xf32> -> vector<2x32xf32>
    %132 = vector.broadcast %10 : vector<1x32xf32> to vector<2x32xf32>
    %133 = arith.addf %131, %132 : vector<2x32xf32>
    %c0_38 = arith.constant 0 : index
    %c0_39 = arith.constant 0 : index
    %c0_40 = arith.constant 0 : index
    %134 = vector.load %arg3[%c0_38, %c0_39, %c0_40] : memref<2x8x32xf32, #tpu.memory_space<vmem>>, vector<2x8x32xf32>
    %c0_41 = arith.constant 0 : index
    %c0_42 = arith.constant 0 : index
    %c0_43 = arith.constant 0 : index
    %135 = vector.load %arg4[%c0_41, %c0_42, %c0_43] : memref<2x8x32xf32, #tpu.memory_space<vmem>>, vector<2x8x32xf32>
    %136 = vector.shape_cast %133 : vector<2x32xf32> to vector<2x1x32xf32>
    %137 = vector.shape_cast %15 : vector<4x32xf32> to vector<1x4x32xf32>
    %138 = vector.broadcast %136 : vector<2x1x32xf32> to vector<2x4x32xf32>
    %139 = vector.broadcast %137 : vector<1x4x32xf32> to vector<2x4x32xf32>
    %140 = arith.mulf %138, %139 : vector<2x4x32xf32>
    "tpu.trace_start"() <{level = 10 : i32, message = "bhd,bsd->bhs"}> : () -> ()
    %cst_44 = arith.constant dense<0.000000e+00> : vector<2x4x8xf32>
    %141 = tpu.matmul %140, %134, %cst_44 {dimension_numbers = #tpu.dot_dimension_numbers<[2], [2], [1], [1], [0, 0, 0, 1, 1, 1], [0], [0]>} : vector<2x4x32xf32>, vector<2x8x32xf32>, vector<2x4x8xf32> -> vector<2x4x8xf32>
    "tpu.trace_stop"() : () -> ()
    %cst_45 = arith.constant dense<0xFF800000> : vector<2x4xf32>
    %142 = vector.multi_reduction <maximumf>, %141, %cst_45 [2] : vector<2x4x8xf32> to vector<2x4xf32>
    %143 = vector.shape_cast %142 : vector<2x4xf32> to vector<2x4x1xf32>
    %144 = vector.broadcast %143 : vector<2x4x1xf32> to vector<2x4x8xf32>
    %145 = arith.subf %141, %144 : vector<2x4x8xf32>
    %146 = math.exp %145 : vector<2x4x8xf32>
    %cst_46 = arith.constant dense<0.000000e+00> : vector<2x4xf32>
    %147 = vector.multi_reduction <add>, %146, %cst_46 [2] : vector<2x4x8xf32> to vector<2x4xf32>
    %148 = vector.shape_cast %147 : vector<2x4xf32> to vector<2x4x1xf32>
    %149 = tpu.reciprocal %148 {approx = true} : vector<2x4x1xf32> -> vector<2x4x1xf32>
    %150 = vector.broadcast %149 : vector<2x4x1xf32> to vector<2x4x8xf32>
    %151 = arith.mulf %146, %150 : vector<2x4x8xf32>
    "tpu.trace_start"() <{level = 10 : i32, message = "bhs,bsd->bhd"}> : () -> ()
    %cst_47 = arith.constant dense<0.000000e+00> : vector<2x4x32xf32>
    %152 = tpu.matmul %151, %135, %cst_47 {dimension_numbers = #tpu.dot_dimension_numbers<[2], [1], [1], [2], [0, 0, 0, 1, 1, 2], [0], [0]>} : vector<2x4x8xf32>, vector<2x8x32xf32>, vector<2x4x32xf32> -> vector<2x4x32xf32>
    "tpu.trace_stop"() : () -> ()
    %153 = vector.shape_cast %15 : vector<4x32xf32> to vector<1x4x32xf32>
    %154 = vector.broadcast %153 : vector<1x4x32xf32> to vector<2x4x32xf32>
    %155 = arith.mulf %152, %154 : vector<2x4x32xf32>
    %cst_48 = arith.constant dense<0.000000e+00> : vector<2x32xf32>
    %156 = vector.multi_reduction <add>, %155, %cst_48 [1] : vector<2x4x32xf32> to vector<2x32xf32>
    %157 = vector.extract_strided_slice %0 {offsets = [64, 64], sizes = [32, 32], strides = [1, 1]} : vector<224x128xbf16> to vector<32x32xbf16>
    %158 = arith.truncf %156 : vector<2x32xf32> to vector<2x32xbf16>
    %cst_49 = arith.constant dense<0.000000e+00> : vector<2x32xf32>
    %159 = tpu.matmul %158, %157, %cst_49 {dimension_numbers = #tpu.dot_dimension_numbers<[1], [0], [0], [1], [0, 0, 1, 1], [], []>} : vector<2x32xbf16>, vector<32x32xbf16>, vector<2x32xf32> -> vector<2x32xf32>
    %160 = arith.addf %106, %159 : vector<2x32xf32>
    %161 = vector.broadcast %11 : vector<1x32xf32> to vector<2x32xf32>
    %162 = arith.addf %160, %161 : vector<2x32xf32>
    %cst_50 = arith.constant dense<0.000000e+00> : vector<2xf32>
    %163 = vector.multi_reduction <add>, %162, %cst_50 [1] : vector<2x32xf32> to vector<2xf32>
    %164 = vector.shape_cast %163 : vector<2xf32> to vector<2x1xf32>
    %cst_51 = arith.constant 3.200000e+01 : f32
    %165 = vector.broadcast %cst_51 : f32 to vector<2x1xf32>
    %166 = arith.divf %164, %165 : vector<2x1xf32>
    %167 = vector.broadcast %166 : vector<2x1xf32> to vector<2x32xf32>
    %168 = arith.subf %162, %167 : vector<2x32xf32>
    %169 = arith.mulf %168, %168 : vector<2x32xf32>
    %cst_52 = arith.constant dense<0.000000e+00> : vector<2xf32>
    %170 = vector.multi_reduction <add>, %169, %cst_52 [1] : vector<2x32xf32> to vector<2xf32>
    %171 = vector.shape_cast %170 : vector<2xf32> to vector<2x1xf32>
    %cst_53 = arith.constant 3.200000e+01 : f32
    %172 = vector.broadcast %cst_53 : f32 to vector<2x1xf32>
    %173 = arith.divf %171, %172 : vector<2x1xf32>
    %174 = vector.broadcast %166 : vector<2x1xf32> to vector<2x32xf32>
    %175 = arith.subf %162, %174 : vector<2x32xf32>
    %cst_54 = arith.constant 9.99999974E-6 : f32
    %176 = vector.broadcast %cst_54 : f32 to vector<2x1xf32>
    %177 = arith.addf %173, %176 : vector<2x1xf32>
    %178 = math.rsqrt %177 : vector<2x1xf32>
    %179 = vector.broadcast %178 : vector<2x1xf32> to vector<2x32xf32>
    %180 = arith.mulf %175, %179 : vector<2x32xf32>
    %181 = vector.broadcast %12 : vector<1x32xf32> to vector<2x32xf32>
    %182 = arith.mulf %180, %181 : vector<2x32xf32>
    %183 = vector.broadcast %13 : vector<1x32xf32> to vector<2x32xf32>
    %184 = arith.addf %182, %183 : vector<2x32xf32>
    %185 = vector.extract_strided_slice %0 {offsets = [32, 0], sizes = [32, 128], strides = [1, 1]} : vector<224x128xbf16> to vector<32x128xbf16>
    %186 = arith.truncf %184 : vector<2x32xf32> to vector<2x32xbf16>
    %cst_55 = arith.constant dense<0.000000e+00> : vector<2x128xf32>
    %187 = tpu.matmul %186, %185, %cst_55 {dimension_numbers = #tpu.dot_dimension_numbers<[1], [0], [0], [1], [0, 0, 1, 1], [], []>} : vector<2x32xbf16>, vector<32x128xbf16>, vector<2x128xf32> -> vector<2x128xf32>
    %188 = vector.broadcast %16 : vector<1x128xf32> to vector<2x128xf32>
    %189 = arith.addf %187, %188 : vector<2x128xf32>
    %cst_56 = arith.constant 5.000000e-01 : f32
    %190 = vector.broadcast %cst_56 : f32 to vector<2x128xf32>
    %191 = arith.mulf %190, %189 : vector<2x128xf32>
    %cst_57 = arith.constant 0.707106769 : f32
    %192 = vector.broadcast %cst_57 : f32 to vector<2x128xf32>
    %193 = arith.mulf %189, %192 : vector<2x128xf32>
    %194 = math.erf %193 : vector<2x128xf32>
    %cst_58 = arith.constant 1.000000e+00 : f32
    %195 = vector.broadcast %cst_58 : f32 to vector<2x128xf32>
    %196 = arith.addf %195, %194 : vector<2x128xf32>
    %197 = arith.mulf %191, %196 : vector<2x128xf32>
    %198 = vector.extract_strided_slice %0 {offsets = [96, 0], sizes = [128, 32], strides = [1, 1]} : vector<224x128xbf16> to vector<128x32xbf16>
    %199 = arith.truncf %197 : vector<2x128xf32> to vector<2x128xbf16>
    %cst_59 = arith.constant dense<0.000000e+00> : vector<2x32xf32>
    %200 = tpu.matmul %199, %198, %cst_59 {dimension_numbers = #tpu.dot_dimension_numbers<[1], [0], [0], [1], [0, 0, 1, 1], [], []>} : vector<2x128xbf16>, vector<128x32xbf16>, vector<2x32xf32> -> vector<2x32xf32>
    %201 = arith.addf %162, %200 : vector<2x32xf32>
    %202 = vector.broadcast %14 : vector<1x32xf32> to vector<2x32xf32>
    %203 = arith.addf %201, %202 : vector<2x32xf32>
    %204 = vector.shape_cast %203 : vector<2x32xf32> to vector<2x1x32xf32>
    %c0_60 = arith.constant 0 : index
    %c0_61 = arith.constant 0 : index
    %c0_62 = arith.constant 0 : index
    %205 = vector.load %arg8[%c0_60, %c0_61, %c0_62] : memref<2x1x32xf32, #tpu.memory_space<vmem>>, vector<2x1x32xf32>
    tpu.vector_store %arg8[%c0_60, %c0_61, %c0_62], %204 {strides = array<i32>} : memref<2x1x32xf32, #tpu.memory_space<vmem>>, vector<2x1x32xf32>,
    return
  }
}

</mosaic_0001>

<llo_original>
// kernel: residual_attention_block.1
$region0: #{residual_attention_block.1}
  #allocation0 [shape = 'u32[]', space=smem, size = 0x4, offset = 0x4, fixed_abs, tag = 'smem constant byte address 0x4 - core index']
  #allocation1 [shape = 'u32[144,128]{1,0:T(1,128)}', space=vmem, size = 0x12000, scoped, tag = 'internal scratch']
  %s0 = inlined_call_operand.hbm [shape: f32[2,1,32], index: 0, kind: input, shape index: {}, may-alias: {0,8}]
  %s1 = inlined_call_operand.hbm [shape: f32[2,16,32], index: 1, kind: input, shape index: {}, may-alias: {1,9}]
  %s2 = inlined_call_operand.hbm [shape: f32[2,16,32], index: 2, kind: input, shape index: {}, may-alias: {2,10}]
  %s3 = inlined_call_operand.hbm [shape: f32[2,8,32], index: 3, kind: input, shape index: {}]
  %s4 = inlined_call_operand.hbm [shape: f32[2,8,32], index: 4, kind: input, shape index: {}]
  %s5 = inlined_call_operand.vmem [shape: f32[1,16], index: 5, kind: input, shape index: {}]
  %s6 = inlined_call_operand.vmem [shape: bf16[224,128], index: 6, kind: input, shape index: {}]
  %s7 = inlined_call_operand.hbm [shape: f32[24,128], index: 7, kind: input, shape index: {}]
  %s8 = inlined_call_operand.hbm [shape: f32[2,1,32], index: 8, kind: output, shape index: {0}, may-alias: {0,8}]
  %s9 = inlined_call_operand.hbm [shape: f32[2,16,32], index: 9, kind: output, shape index: {1}, may-alias: {1,9}]
  %s10 = inlined_call_operand.hbm [shape: f32[2,16,32], index: 10, kind: output, shape index: {2}, may-alias: {2,10}]
  %11 = xla_tuple %s8, %s9, %s10
  %s12 = sld [smem:[#allocation0]]
  $region82: #{residual_attention_block.1} parent=0
    _
  %s14 = ssub.s32 1, %s12
  %s15 = scalar_select 0, %s14, %s12
  $region1: #{residual_attention_block.1} parent=0
    #allocation2 [shape = 'u8[1024]{0}', space=vmem, size = 0x400, scoped, tag = 'input window, operand 0, single buffered']
    #allocation3 [shape = 's32[1]{0}', space=sflag, size = 0x4, scoped, tag = 'scoped memory for residual_attention_block.1']
    #allocation4 [shape = 's32[1]{0}', space=sflag, size = 0x4, scoped, tag = 'scoped memory for residual_attention_block.1']
    #allocation5 [shape = 'u8[16384]{0}', space=vmem, size = 0x4000, scoped, tag = 'input window, operand 1, single buffered']
    #allocation6 [shape = 's32[1]{0}', space=sflag, size = 0x4, scoped, tag = 'scoped memory for residual_attention_block.1']
    #allocation7 [shape = 'u8[16384]{0}', space=vmem, size = 0x4000, scoped, tag = 'input window, operand 2, single buffered']
    #allocation8 [shape = 'u8[8192]{0}', space=vmem, size = 0x2000, scoped, tag = 'input window, operand 3, single buffered']
    #allocation9 [shape = 's32[1]{0}', space=sflag, size = 0x4, scoped, tag = 'scoped memory for residual_attention_block.1']
    #allocation10 [shape = 'u8[8192]{0}', space=vmem, size = 0x2000, scoped, tag = 'input window, operand 4, single buffered']
    #allocation11 [shape = 'u8[12288]{0}', space=vmem, size = 0x3000, scoped, tag = 'input window, operand 7, single buffered']
    #allocation12 [shape = 's32[1]{0}', space=sflag, size = 0x4, scoped, tag = 'scoped memory for residual_attention_block.1']
    #allocation13 [shape = 'u8[1024]{0}', space=vmem, size = 0x400, scoped, tag = 'output window, operand 0, single buffered']
    #allocation14 [shape = 'u8[16384]{0}', space=vmem, size = 0x4000, scoped, tag = 'output window, operand 1, single buffered']
    #allocation15 [shape = 's32[1]{0}', space=sflag, size = 0x4, scoped, tag = 'scoped memory for residual_attention_block.1']
    #allocation16 [shape = 'u8[16384]{0}', space=vmem, size = 0x4000, scoped, tag = 'output window, operand 2, single buffered']
    %16 = vsyncpa [#allocation3], 0
    %17 = vsyncpa [#allocation6], 0
    %18 = vsyncpa [#allocation9], 0
    %19 = vsyncpa [#allocation12], 0
    %20 = vsyncpa [#allocation4], 0
    %21 = vsyncpa [#allocation15], 0
    // Predicated region
    $region2: #{residual_attention_block.1} parent=1 // pred_check
      _
    $region3: #{residual_attention_block.1} parent=1 // pred_check_branch
      %23 = sbr.rel (0) target = $region5
    $region4: #{residual_attention_block.1} parent=1 // pred_region
      %s25 = ssub.s32 32, 32
      %26 = vsyncadd [#allocation3], %s25
      %s27 = sshll.u32 [#allocation2], 4
      %s28 = int_to_ptr.vmem [resolvable:$true] %s27
      %33 = dma.hbm_to_vmem [thread:$0]  %s0, 32, %s28, [#allocation3], 16, 16, 1
    $region5: #{residual_attention_block.1} parent=1 // pred_fallthru
      _
    // Predicated region
    $region6: #{residual_attention_block.1} parent=1 // pred_check
      _
    $region7: #{residual_attention_block.1} parent=1 // pred_check_branch
      %35 = sbr.rel (0) target = $region9
    $region8: #{residual_attention_block.1} parent=1 // pred_region
      %s37 = ssub.s32 512, 512
      %38 = vsyncadd [#allocation6], %s37
      %s39 = sshll.u32 [#allocation5], 4
      %s40 = int_to_ptr.vmem [resolvable:$true] %s39
      %45 = dma.hbm_to_vmem [thread:$0]  %s1, 512, %s40, [#allocation6], 128, 128, 8
    $region9: #{residual_attention_block.1} parent=1 // pred_fallthru
      _
    // Predicated region
    $region10: #{residual_attention_block.1} parent=1 // pred_check
      _
    $region11: #{residual_attention_block.1} parent=1 // pred_check_branch
      %47 = sbr.rel (0) target = $region13
    $region12: #{residual_attention_block.1} parent=1 // pred_region
      %s49 = ssub.s32 512, 512
      %50 = vsyncadd [#allocation6], %s49
      %s51 = sshll.u32 [#allocation7], 4
      %s52 = int_to_ptr.vmem [resolvable:$true] %s51
      %57 = dma.hbm_to_vmem [thread:$0]  %s2, 512, %s52, [#allocation6], 128, 128, 8
    $region13: #{residual_attention_block.1} parent=1 // pred_fallthru
      _
    // Predicated region
    $region14: #{residual_attention_block.1} parent=1 // pred_check
      _
    $region15: #{residual_attention_block.1} parent=1 // pred_check_branch
      %59 = sbr.rel (0) target = $region17
    $region16: #{residual_attention_block.1} parent=1 // pred_region
      %s61 = ssub.s32 256, 256
      %62 = vsyncadd [#allocation9], %s61
      %s63 = sshll.u32 [#allocation8], 4
      %s64 = int_to_ptr.vmem [resolvable:$true] %s63
      %69 = dma.hbm_to_vmem [thread:$0]  %s3, 256, %s64, [#allocation9], 128, 128, 8
    $region17: #{residual_attention_block.1} parent=1 // pred_fallthru
      _
    // Predicated region
    $region18: #{residual_attention_block.1} parent=1 // pred_check
      _
    $region19: #{residual_attention_block.1} parent=1 // pred_check_branch
      %71 = sbr.rel (0) target = $region21
    $region20: #{residual_attention_block.1} parent=1 // pred_region
      %s73 = ssub.s32 256, 256
      %74 = vsyncadd [#allocation9], %s73
      %s75 = sshll.u32 [#allocation10], 4
      %s76 = int_to_ptr.vmem [resolvable:$true] %s75
      %81 = dma.hbm_to_vmem [thread:$0]  %s4, 256, %s76, [#allocation9], 128, 128, 8
    $region21: #{residual_attention_block.1} parent=1 // pred_fallthru
      _
    // Predicated region
    $region22: #{residual_attention_block.1} parent=1 // pred_check
      _
    $region23: #{residual_attention_block.1} parent=1 // pred_check_branch
      %83 = sbr.rel (0) target = $region25
    $region24: #{residual_attention_block.1} parent=1 // pred_region
      _
    $region25: #{residual_attention_block.1} parent=1 // pred_fallthru
      _
    // Predicated region
    $region26: #{residual_attention_block.1} parent=1 // pred_check
      _
    $region27: #{residual_attention_block.1} parent=1 // pred_check_branch
      %85 = sbr.rel (0) target = $region29
    $region28: #{residual_attention_block.1} parent=1 // pred_region
      _
    $region29: #{residual_attention_block.1} parent=1 // pred_fallthru
      _
    // Predicated region
    $region30: #{residual_attention_block.1} parent=1 // pred_check
      _
    $region31: #{residual_attention_block.1} parent=1 // pred_check_branch
      %87 = sbr.rel (0) target = $region33
    $region32: #{residual_attention_block.1} parent=1 // pred_region
      %s89 = ssub.s32 384, 384
      %90 = vsyncadd [#allocation12], %s89
      %s91 = sshll.u32 [#allocation11], 4
      %s92 = int_to_ptr.vmem [resolvable:$true] %s91
      %97 = dma.hbm_to_vmem [thread:$0]  %s7, 384, %s92, [#allocation12], 128, 128, 8
    $region33: #{residual_attention_block.1} parent=1 // pred_fallthru
      _
    // Predicated region
    $region34: #{residual_attention_block.1} parent=1 // pred_check
      _
    $region35: #{residual_attention_block.1} parent=1 // pred_check_branch
      %99 = sbr.rel (0) target = $region37
    $region36: #{residual_attention_block.1} parent=1 // pred_region
      %100 = dma.done [#allocation3], 32
    $region37: #{residual_attention_block.1} parent=1 // pred_fallthru
      _
    // Predicated region
    $region38: #{residual_attention_block.1} parent=1 // pred_check
      _
    $region39: #{residual_attention_block.1} parent=1 // pred_check_branch
      %102 = sbr.rel (0) target = $region41
    $region40: #{residual_attention_block.1} parent=1 // pred_region
      %103 = dma.done [#allocation6], 512
    $region41: #{residual_attention_block.1} parent=1 // pred_fallthru
      _
    // Predicated region
    $region42: #{residual_attention_block.1} parent=1 // pred_check
      _
    $region43: #{residual_attention_block.1} parent=1 // pred_check_branch
      %105 = sbr.rel (0) target = $region45
    $region44: #{residual_attention_block.1} parent=1 // pred_region
      %106 = dma.done [#allocation6], 512
    $region45: #{residual_attention_block.1} parent=1 // pred_fallthru
      _
    // Predicated region
    $region46: #{residual_attention_block.1} parent=1 // pred_check
      _
    $region47: #{residual_attention_block.1} parent=1 // pred_check_branch
      %108 = sbr.rel (0) target = $region49
    $region48: #{residual_attention_block.1} parent=1 // pred_region
      %109 = dma.done [#allocation9], 256
    $region49: #{residual_attention_block.1} parent=1 // pred_fallthru
      _
    // Predicated region
    $region50: #{residual_attention_block.1} parent=1 // pred_check
      _
    $region51: #{residual_attention_block.1} parent=1 // pred_check_branch
      %111 = sbr.rel (0) target = $region53
    $region52: #{residual_attention_block.1} parent=1 // pred_region
      %112 = dma.done [#allocation9], 256
    $region53: #{residual_attention_block.1} parent=1 // pred_fallthru
      _
    // Predicated region
    $region54: #{residual_attention_block.1} parent=1 // pred_check
      _
    $region55: #{residual_attention_block.1} parent=1 // pred_check_branch
      %114 = sbr.rel (0) target = $region57
    $region56: #{residual_attention_block.1} parent=1 // pred_region
      %115 = dma.done [#allocation12], 384
    $region57: #{residual_attention_block.1} parent=1 // pred_fallthru
      _
    %v117 = vld [vmem:[%s6] sm:$0xf]
    %v118 = vld [vmem:[%s6 + $0x4] sm:$0xf]
    %v119 = vld [vmem:[%s6 + $0x8] sm:$0xf]
    %v120 = vld [vmem:[%s6 + $0xc] sm:$0xf]
    %v121 = vld [vmem:[%s6 + $0x10] sm:$0xf]
    %v122 = vld [vmem:[%s6 + $0x14] sm:$0xf]
    %v123 = vld [vmem:[%s6 + $0x18] sm:$0xf]
    %v124 = vld [vmem:[%s6 + $0x1c] sm:$0xf]
    %v125 = vld [vmem:[%s6 + $0x20] sm:$0xf]
    %v126 = vld [vmem:[%s6 + $0x24] sm:$0xf]
    %v127 = vld [vmem:[%s6 + $0x28] sm:$0xf]
    %v128 = vld [vmem:[%s6 + $0x2c] sm:$0xf]
    %v129 = vld [vmem:[%s6 + $0x30] sm:$0xf]
    %v130 = vld [vmem:[%s6 + $0x34] sm:$0xf]
    %v131 = vld [vmem:[%s6 + $0x38] sm:$0xf]
    %v132 = vld [vmem:[%s6 + $0x3c] sm:$0xf]
    %v133 = vld [vmem:[%s6 + $0x40] sm:$0xf]
    %v134 = vld [vmem:[%s6 + $0x44] sm:$0xf]
    %v135 = vld [vmem:[%s6 + $0x48] sm:$0xf]
    %v136 = vld [vmem:[%s6 + $0x4c] sm:$0xf]
    %v137 = vld [vmem:[%s6 + $0x50] sm:$0xf]
    %v138 = vld [vmem:[%s6 + $0x54] sm:$0xf]
    %v139 = vld [vmem:[%s6 + $0x58] sm:$0xf]
    %v140 = vld [vmem:[%s6 + $0x5c] sm:$0xf]
    %v141 = vld [vmem:[%s6 + $0x60] sm:$0xf]
    %v142 = vld [vmem:[%s6 + $0x64] sm:$0xf]
    %v143 = vld [vmem:[%s6 + $0x68] sm:$0xf]
    %v144 = vld [vmem:[%s6 + $0x6c] sm:$0xf]
    %v145 = vld [vmem:[#allocation11] sm:$0xff]
    %v146 = vld [vmem:[#allocation11 + $0x8] sm:$0xff]
    %v147 = vld [vmem:[#allocation11 + $0x10] sm:$0xff]
    %v148 = vld [vmem:[#allocation2] sm:$0x1]
    %v149 = vld [vmem:[#allocation2 + $0x1] sm:$0x1]
    %v152 = vcombine.low %v148, %v149
    %v154 = vunpack.c.l.s4 1966171168
    %v155 = vunpack.c.0.s8 %v154
    %v156 = vlaneseq
    %v157 = vshrl.u32 %v156, 7
    %v158 = vsub.s32 %v155, %v157
    %v159 = vrot.slane %v152, %v158
    %v161 = vunpack.c.l.s4 1966171168
    %v162 = vunpack.c.0.s8 %v161
    %v163 = vlaneseq
    %v164 = vshrl.u32 %v163, 7
    %v165 = vsub.s32 %v162, %v164
    %v166 = vrot.slane %v159, %v165
    %vm168 = vcmask 254976
    %v169 = vsel %vm168, %v166, 0.0
    %170 = vadd.xlane.f32.xlu0 %v169
    %v171 = vpop.xlane.xlu0 %170
    %v172 = vrcp.pop 32.0
    %v173 = vmul.f32 %v171, %v172
    %v175 = vlaneseq
    %v176 = vshrl.u32 %v175, 7
    %v177 = vsub.s32 0, %v176
    %v178 = vrot.slane %v173, %v177
    %v179 = vlaneseq
    %v180 = vshrl.u32 %v179, 7
    %v181 = vsub.s32 1, %v180
    %v182 = vrot.slane %v173, %v181
    %v185 = vsub.f32 %v148, %v178
    %v186 = vsub.f32 %v149, %v182
    %v187 = vmul.f32 %v185, %v185
    %v188 = vmul.f32 %v186, %v186
    %v191 = vcombine.low %v187, %v188
    %v193 = vunpack.c.l.s4 1966171168
    %v194 = vunpack.c.0.s8 %v193
    %v195 = vlaneseq
    %v196 = vshrl.u32 %v195, 7
    %v197 = vsub.s32 %v194, %v196
    %v198 = vrot.slane %v191, %v197
    %v200 = vunpack.c.l.s4 1966171168
    %v201 = vunpack.c.0.s8 %v200
    %v202 = vlaneseq
    %v203 = vshrl.u32 %v202, 7
    %v204 = vsub.s32 %v201, %v203
    %v205 = vrot.slane %v198, %v204
    %v207 = vsel %vm168, %v205, 0.0
    %208 = vadd.xlane.f32.xlu0 %v207
    %v209 = vpop.xlane.xlu0 %208
    %v210 = vmul.f32 %v209, %v172
    %v211 = vadd.f32 %v210, 1e-05
    %v212 = vrsqrt.pop %v211
    %v214 = vlaneseq
    %v215 = vshrl.u32 %v214, 7
    %v216 = vsub.s32 0, %v215
    %v217 = vrot.slane %v212, %v216
    %v218 = vlaneseq
    %v219 = vshrl.u32 %v218, 7
    %v220 = vsub.s32 1, %v219
    %v221 = vrot.slane %v212, %v220
    %v224 = vmul.f32 %v185, %v217
    %v225 = vmul.f32 %v186, %v221
    %v226 = vlaneseq
    %v227 = vshrl.u32 %v226, 7
    %v228 = vsub.s32 0, %v227
    %v229 = vrot.slane %v145, %v228
    %v232 = vunpack.c.l.s4 1966171168
    %v233 = vunpack.c.0.s8 %v232
    %v234 = vlaneseq
    %v235 = vshrl.u32 %v234, 7
    %v236 = vsub.s32 %v233, %v235
    %v237 = vrot.slane %v229, %v236
    %v238 = vcombine.high %v237, %v237
    %v240 = vunpack.c.l.s4 1966171168
    %v241 = vunpack.c.0.s8 %v240
    %v242 = vlaneseq
    %v243 = vshrl.u32 %v242, 7
    %v244 = vsub.s32 %v241, %v243
    %v245 = vrot.slane %v237, %v244
    %v247 = vunpack.c.l.s4 1966171168
    %v248 = vunpack.c.0.s8 %v247
    %v249 = vlaneseq
    %v250 = vshrl.u32 %v249, 7
    %v251 = vsub.s32 %v248, %v250
    %v252 = vrot.slane %v238, %v251
    %v255 = vmul.f32 %v224, %v245
    %v256 = vmul.f32 %v225, %v252
    %v257 = vlaneseq
    %v258 = vshrl.u32 %v257, 7
    %v259 = vsub.s32 1, %v258
    %v260 = vrot.slane %v145, %v259
    %v263 = vunpack.c.l.s4 1966171168
    %v264 = vunpack.c.0.s8 %v263
    %v265 = vlaneseq
    %v266 = vshrl.u32 %v265, 7
    %v267 = vsub.s32 %v264, %v266
    %v268 = vrot.slane %v260, %v267
    %v269 = vcombine.high %v268, %v268
    %v271 = vunpack.c.l.s4 1966171168
    %v272 = vunpack.c.0.s8 %v271
    %v273 = vlaneseq
    %v274 = vshrl.u32 %v273, 7
    %v275 = vsub.s32 %v272, %v274
    %v276 = vrot.slane %v268, %v275
    %v278 = vunpack.c.l.s4 1966171168
    %v279 = vunpack.c.0.s8 %v278
    %v280 = vlaneseq
    %v281 = vshrl.u32 %v280, 7
    %v282 = vsub.s32 %v279, %v281
    %v283 = vrot.slane %v269, %v282
    %v286 = vadd.f32 %v255, %v276
    %v287 = vadd.f32 %v256, %v283
    %v288 = vpack.c.bf16 %v286, %v286
    %v289 = vpack.c.bf16 %v287, %v287
    %v292 = vunpack.c.l.b16 %v288
    %v293 = vunpack.c.l.b16 %v289
    %v294 = vrot.slane %v293, 7
    %vm295 = vcmask 1041409
    %v296 = vsel %vm295, %v294, %v292
    %v297 = vpack.c.b16 %v296, %v296
    %v302 = vunpack.c.l.b16 %v117
    %v303 = vunpack.c.l.b16 %v118
    %v304 = vunpack.c.l.b16 %v119
    %v305 = vunpack.c.l.b16 %v120
    %v306 = vpack.c.b16 %v303, %v302
    %v307 = vpack.c.b16 %v305, %v304
    %vm310 = vcmask 261120
    %v312 = vsel %vm310, %v297, 0
    %314 = vmatprep.subr.bf16.mxu0 0
    %315 = vmatpush1.bf16.msra.mxu0 %v306
    %316 = vmatprep.subr.bf16.mxu0 0
    %317 = vmatpush1.bf16.msra.mxu0 %v307
    %318 = vmatprep.subr.bf16.mxu0 0
    %319 = vmatpush1.bf16.msra.mxu0 0
    %320 = vmatprep.subr.bf16.mxu0 0
    %321 = vmatpush1.bf16.msra.mxu0 0
    %322 = vmatprep.subr.bf16.mxu0 0
    %323 = vmatpush1.bf16.msra.mxu0 0
    %324 = vmatprep.subr.bf16.mxu0 0
    %325 = vmatpush1.bf16.msra.mxu0 0
    %326 = vmatprep.subr.bf16.mxu0 0
    %327 = vmatpush1.bf16.msra.mxu0 0
    %328 = vmatprep.subr.bf16.mxu0 0
    %329 = vmatpush1.bf16.msra.mxu0 0
    %330 = vmatprep.subr.bf16.mxu0 0
    %331 = vmatpush1.bf16.msra.mxu0 0
    %332 = vmatprep.subr.bf16.mxu0 0
    %333 = vmatpush1.bf16.msra.mxu0 0
    %334 = vmatprep.subr.bf16.mxu0 0
    %335 = vmatpush1.bf16.msra.mxu0 0
    %336 = vmatprep.subr.bf16.mxu0 0
    %337 = vmatpush1.bf16.msra.mxu0 0
    %338 = vmatprep.subr.bf16.mxu0 0
    %339 = vmatpush1.bf16.msra.mxu0 0
    %340 = vmatprep.subr.bf16.mxu0 0
    %341 = vmatpush1.bf16.msra.mxu0 0
    %342 = vmatprep.subr.bf16.mxu0 0
    %343 = vmatpush1.bf16.msra.mxu0 0
    %344 = vmatprep.subr.bf16.mxu0 0
    %345 = vmatpush1.bf16.msra.mxu0 0
    %346 = vmatprep.mubr.bf16.mxu0 0
    %347 = vmatmul.mubr.bf16.gmra.mrb[0].mxu0 %v312
    %v348 = vpop.f32.mrb[0].mxu0
    %v349 = vadd.f32 0.0, %v348
    %v350 = vpop.f32.mrb[0].mxu0
    %v351 = vpop.f32.mrb[0].mxu0
    %v352 = vpop.f32.mrb[0].mxu0
    %353 = vdwg.mxu0
    %v354 = vlaneseq
    %v355 = vshrl.u32 %v354, 7
    %v356 = vsub.s32 2, %v355
    %v357 = vrot.slane %v145, %v356
    %v358 = vadd.f32 %v349, %v357
    %v359 = vlaneseq
    %v360 = vshrl.u32 %v359, 7
    %v361 = vsub.s32 3, %v360
    %v362 = vrot.slane %v145, %v361
    %364 = vrot.lane.b32.xlu0 %v362, 64
    %v365 = vpop.permute.xlu0 %364
    %v367 = vadd.f32 %v349, %v365
    %v368 = vlaneseq
    %v369 = vshrl.u32 %v368, 7
    %v370 = vadd.s32 %v369, 8
    %vm371 = vcmp.eq.s32.totalorder %v369, 15
    %vm372 = vcmp.eq.s32.totalorder %v370, 15
    %v373 = vld [vmem:[#allocation5] sm:$0xff]
    %v374 = vld [vmem:[#allocation5 + $0x8] sm:$0xff]
    %v375 = vld [vmem:[#allocation5 + $0x10] sm:$0xff]
    %v376 = vld [vmem:[#allocation5 + $0x18] sm:$0xff]
    %v377 = vrot.slane %v373, 1
    %v378 = vrot.slane %v374, 1
    %v379 = vrot.slane %v375, 1
    %v380 = vrot.slane %v376, 1
    %vm381 = vcmp.lt.s32.totalorder %v369, 7
    %v382 = vsel %vm381, %v379, %v380
    %v383 = vsel %vm381, %v378, %v379
    %v384 = vsel %vm381, %v377, %v378
    %v385 = vsel %vm381, %v380, %v377
    %v388 = vunpack.c.l.s4 1966171168
    %v389 = vunpack.c.0.s8 %v388
    %v390 = vlaneseq
    %v391 = vshrl.u32 %v390, 7
    %v392 = vsub.s32 %v389, %v391
    %v393 = vrot.slane %v349, %v392
    %v394 = vcombine.high %v393, %v393
    %v396 = vunpack.c.l.s4 1966171168
    %v397 = vunpack.c.0.s8 %v396
    %v398 = vlaneseq
    %v399 = vshrl.u32 %v398, 7
    %v400 = vsub.s32 %v397, %v399
    %v401 = vrot.slane %v393, %v400
    %v403 = vunpack.c.l.s4 1966171168
    %v404 = vunpack.c.0.s8 %v403
    %v405 = vlaneseq
    %v406 = vshrl.u32 %v405, 7
    %v407 = vsub.s32 %v404, %v406
    %v408 = vrot.slane %v394, %v407
    %v409 = vsel %vm371, 1, 0
    %v410 = vsel %vm372, 1, 0
    %vm411 = vcmp.eq.s32.totalorder %v409, 1
    %vm412 = vcmp.eq.s32.totalorder %v410, 1
    %v413 = vlaneseq
    %v414 = vshrl.u32 %v413, 7
    %v415 = vsub.s32 0, %v414
    %v416 = vrot.slane %v401, %v415
    %v417 = vlaneseq
    %v418 = vshrl.u32 %v417, 7
    %v419 = vsub.s32 0, %v418
    %v420 = vrot.slane %v408, %v419
    %427 = vrot.lane.b32.xlu0 %v384, 32
    %v428 = vpop.permute.xlu0 %427
    %429 = vrot.lane.b32.xlu0 %v383, 32
    %v430 = vpop.permute.xlu0 %429
    %431 = vrot.lane.b32.xlu0 %v382, 32
    %v432 = vpop.permute.xlu0 %431
    %433 = vrot.lane.b32.xlu0 %v385, 32
    %v434 = vpop.permute.xlu0 %433
    %v439 = vsel %vm411, %v416, %v428
    %v440 = vsel %vm412, %v416, %v430
    %v441 = vsel %vm411, %v420, %v432
    %v442 = vsel %vm412, %v420, %v434
    %v443 = vld [vmem:[#allocation7] sm:$0xff]
    %v444 = vld [vmem:[#allocation7 + $0x8] sm:$0xff]
    %v445 = vld [vmem:[#allocation7 + $0x10] sm:$0xff]
    %v446 = vld [vmem:[#allocation7 + $0x18] sm:$0xff]
    %v447 = vrot.slane %v443, 1
    %v448 = vrot.slane %v444, 1
    %v449 = vrot.slane %v445, 1
    %v450 = vrot.slane %v446, 1
    %v451 = vsel %vm381, %v449, %v450
    %v452 = vsel %vm381, %v448, %v449
    %v453 = vsel %vm381, %v447, %v448
    %v454 = vsel %vm381, %v450, %v447
    %v457 = vunpack.c.l.s4 1966171168
    %v458 = vunpack.c.0.s8 %v457
    %v459 = vlaneseq
    %v460 = vshrl.u32 %v459, 7
    %v461 = vsub.s32 %v458, %v460
    %v462 = vrot.slane %v367, %v461
    %v463 = vcombine.high %v462, %v462
    %v465 = vunpack.c.l.s4 1966171168
    %v466 = vunpack.c.0.s8 %v465
    %v467 = vlaneseq
    %v468 = vshrl.u32 %v467, 7
    %v469 = vsub.s32 %v466, %v468
    %v470 = vrot.slane %v462, %v469
    %v472 = vunpack.c.l.s4 1966171168
    %v473 = vunpack.c.0.s8 %v472
    %v474 = vlaneseq
    %v475 = vshrl.u32 %v474, 7
    %v476 = vsub.s32 %v473, %v475
    %v477 = vrot.slane %v463, %v476
    %v478 = vlaneseq
    %v479 = vshrl.u32 %v478, 7
    %v480 = vsub.s32 0, %v479
    %v481 = vrot.slane %v470, %v480
    %v482 = vlaneseq
    %v483 = vshrl.u32 %v482, 7
    %v484 = vsub.s32 0, %v483
    %v485 = vrot.slane %v477, %v484
    %492 = vrot.lane.b32.xlu0 %v453, 64
    %v493 = vpop.permute.xlu0 %492
    %494 = vrot.lane.b32.xlu0 %v452, 64
    %v495 = vpop.permute.xlu0 %494
    %496 = vrot.lane.b32.xlu0 %v451, 64
    %v497 = vpop.permute.xlu0 %496
    %498 = vrot.lane.b32.xlu0 %v454, 64
    %v499 = vpop.permute.xlu0 %498
    %v504 = vsel %vm411, %v481, %v493
    %v505 = vsel %vm412, %v481, %v495
    %v506 = vsel %vm411, %v485, %v497
    %v507 = vsel %vm412, %v485, %v499
    %512 = vrot.lane.b32.xlu0 %v439, 96
    %v513 = vpop.permute.xlu0 %512
    %514 = vrot.lane.b32.xlu0 %v440, 96
    %v515 = vpop.permute.xlu0 %514
    %516 = vrot.lane.b32.xlu0 %v441, 96
    %v517 = vpop.permute.xlu0 %516
    %518 = vrot.lane.b32.xlu0 %v442, 96
    %v519 = vpop.permute.xlu0 %518
    %524 = vst.msk [vmem:[#allocation14] sm:$0xff] %vm310, %v513
    %525 = vst.msk [vmem:[#allocation14 + $0x8] sm:$0xff] %vm310, %v515
    %526 = vst.msk [vmem:[#allocation14 + $0x10] sm:$0xff] %vm310, %v517
    %527 = vst.msk [vmem:[#allocation14 + $0x18] sm:$0xff] %vm310, %v519
    %532 = vrot.lane.b32.xlu0 %v504, 64
    %v533 = vpop.permute.xlu0 %532
    %534 = vrot.lane.b32.xlu0 %v505, 64
    %v535 = vpop.permute.xlu0 %534
    %536 = vrot.lane.b32.xlu0 %v506, 64
    %v537 = vpop.permute.xlu0 %536
    %538 = vrot.lane.b32.xlu0 %v507, 64
    %v539 = vpop.permute.xlu0 %538
    %544 = vst.msk [vmem:[#allocation16] sm:$0xff] %vm310, %v533
    %545 = vst.msk [vmem:[#allocation16 + $0x8] sm:$0xff] %vm310, %v535
    %546 = vst.msk [vmem:[#allocation16 + $0x10] sm:$0xff] %vm310, %v537
    %547 = vst.msk [vmem:[#allocation16 + $0x18] sm:$0xff] %vm310, %v539
    %v548 = vld [vmem:[%s5] sm:$0x1]
    %v551 = vunpack.c.l.s4 1966171168
    %v552 = vunpack.c.0.s8 %v551
    %v553 = vlaneseq
    %v554 = vshrl.u32 %v553, 7
    %v555 = vsub.s32 %v552, %v554
    %v556 = vrot.slane %v358, %v555
    %v557 = vcombine.high %v556, %v556
    %v559 = vunpack.c.l.s4 1966171168
    %v560 = vunpack.c.0.s8 %v559
    %v561 = vlaneseq
    %v562 = vshrl.u32 %v561, 7
    %v563 = vsub.s32 %v560, %v562
    %v564 = vrot.slane %v556, %v563
    %v566 = vunpack.c.l.s4 1966171168
    %v567 = vunpack.c.0.s8 %v566
    %v568 = vlaneseq
    %v569 = vshrl.u32 %v568, 7
    %v570 = vsub.s32 %v567, %v569
    %v571 = vrot.slane %v557, %v570
    %v572 = vlaneseq
    %v573 = vshrl.u32 %v572, 7
    %v574 = vsub.s32 0, %v573
    %v575 = vrot.slane %v564, %v574
    %v576 = vlaneseq
    %v577 = vshrl.u32 %v576, 7
    %v578 = vsub.s32 0, %v577
    %v579 = vrot.slane %v571, %v578
    %v582 = vmul.f32 %v575, %v146
    %v583 = vmul.f32 %v579, %v146
    %v585 = vlaneseq
    %v586 = vshrl.u32 %v585, 7
    %v587 = vsub.s32 0, %v586
    %v588 = vrot.slane %v548, %v587
    %v591 = vrot.slane %v582, 4
    %v592 = vsel %vm310, %v591, 0
    %v594 = vsel %vm310, %v513, 0
    %v596 = vsel %vm310, %v515, 0
    %598 = vmatprep.subr.mxu0 0.0
    %599 = vmatpush1.xpose.msra.mxu0 %v594
    %600 = vmatprep.subr.mxu0 0.0
    %601 = vmatpush1.xpose.msra.mxu0 %v596
    %602 = vmatprep.subr.mxu0 0.0
    %603 = vmatpush1.xpose.msra.mxu0 0.0
    %604 = vmatprep.subr.mxu0 0.0
    %605 = vmatpush1.xpose.msra.mxu0 0.0
    %606 = vmatprep.subr.mxu0 0.0
    %607 = vmatpush1.xpose.msra.mxu0 0.0
    %608 = vmatprep.subr.mxu0 0.0
    %609 = vmatpush1.xpose.msra.mxu0 0.0
    %610 = vmatprep.subr.mxu0 0.0
    %611 = vmatpush1.xpose.msra.mxu0 0.0
    %612 = vmatprep.subr.mxu0 0.0
    %613 = vmatpush1.xpose.msra.mxu0 0.0
    %614 = vmatprep.subr.mxu0 0.0
    %615 = vmatpush1.xpose.msra.mxu0 0.0
    %616 = vmatprep.subr.mxu0 0.0
    %617 = vmatpush1.xpose.msra.mxu0 0.0
    %618 = vmatprep.subr.mxu0 0.0
    %619 = vmatpush1.xpose.msra.mxu0 0.0
    %620 = vmatprep.subr.mxu0 0.0
    %621 = vmatpush1.xpose.msra.mxu0 0.0
    %622 = vmatprep.subr.mxu0 0.0
    %623 = vmatpush1.xpose.msra.mxu0 0.0
    %624 = vmatprep.subr.mxu0 0.0
    %625 = vmatpush1.xpose.msra.mxu0 0.0
    %626 = vmatprep.subr.mxu0 0.0
    %627 = vmatpush1.xpose.msra.mxu0 0.0
    %628 = vmatprep.subr.mxu0 0.0
    %629 = vmatpush1.xpose.msra.mxu0 0.0
    %630 = vmatprep.subr.mxu0 0.0
    %631 = vmatpush1.xpose.msra.mxu0 0.0
    %632 = vmatprep.subr.mxu0 0.0
    %633 = vmatpush1.xpose.msra.mxu0 0.0
    %634 = vmatprep.subr.mxu0 0.0
    %635 = vmatpush1.xpose.msra.mxu0 0.0
    %636 = vmatprep.subr.mxu0 0.0
    %637 = vmatpush1.xpose.msra.mxu0 0.0
    %638 = vmatprep.subr.mxu0 0.0
    %639 = vmatpush1.xpose.msra.mxu0 0.0
    %640 = vmatprep.subr.mxu0 0.0
    %641 = vmatpush1.xpose.msra.mxu0 0.0
    %642 = vmatprep.subr.mxu0 0.0
    %643 = vmatpush1.xpose.msra.mxu0 0.0
    %644 = vmatprep.subr.mxu0 0.0
    %645 = vmatpush1.xpose.msra.mxu0 0.0
    %646 = vmatprep.subr.mxu0 0.0
    %647 = vmatpush1.xpose.msra.mxu0 0.0
    %648 = vmatprep.subr.mxu0 0.0
    %649 = vmatpush1.xpose.msra.mxu0 0.0
    %650 = vmatprep.subr.mxu0 0.0
    %651 = vmatpush1.xpose.msra.mxu0 0.0
    %652 = vmatprep.subr.mxu0 0.0
    %653 = vmatpush1.xpose.msra.mxu0 0.0
    %654 = vmatprep.subr.mxu0 0.0
    %655 = vmatpush1.xpose.msra.mxu0 0.0
    %656 = vmatprep.subr.mxu0 0.0
    %657 = vmatpush1.xpose.msra.mxu0 0.0
    %658 = vmatprep.subr.mxu0 0.0
    %659 = vmatpush1.xpose.msra.mxu0 0.0
    %660 = vmatprep.subr.mxu0 0.0
    %661 = vmatpush1.xpose.msra.mxu0 0.0
    %662 = vmatprep.mubr.f32.mxu0 0.0
    %663 = vmatmul.mubr.f32.gmra.mrb[0].mxu0 %v592
    %v664 = vpop.f32.mrb[0].mxu0
    %v665 = vadd.f32 %v588, %v664
    %v666 = vpop.f32.mrb[0].mxu0
    %667 = vdwg.mxu0
    %v669 = vrot.slane %v583, 4
    %v670 = vsel %vm310, %v669, 0
    %v672 = vsel %vm310, %v517, 0
    %v674 = vsel %vm310, %v519, 0
    %676 = vmatprep.subr.mxu0 0.0
    %677 = vmatpush1.xpose.msra.mxu0 %v672
    %678 = vmatprep.subr.mxu0 0.0
    %679 = vmatpush1.xpose.msra.mxu0 %v674
    %680 = vmatprep.subr.mxu0 0.0
    %681 = vmatpush1.xpose.msra.mxu0 0.0
    %682 = vmatprep.subr.mxu0 0.0
    %683 = vmatpush1.xpose.msra.mxu0 0.0
    %684 = vmatprep.subr.mxu0 0.0
    %685 = vmatpush1.xpose.msra.mxu0 0.0
    %686 = vmatprep.subr.mxu0 0.0
    %687 = vmatpush1.xpose.msra.mxu0 0.0
    %688 = vmatprep.subr.mxu0 0.0
    %689 = vmatpush1.xpose.msra.mxu0 0.0
    %690 = vmatprep.subr.mxu0 0.0
    %691 = vmatpush1.xpose.msra.mxu0 0.0
    %692 = vmatprep.subr.mxu0 0.0
    %693 = vmatpush1.xpose.msra.mxu0 0.0
    %694 = vmatprep.subr.mxu0 0.0
    %695 = vmatpush1.xpose.msra.mxu0 0.0
    %696 = vmatprep.subr.mxu0 0.0
    %697 = vmatpush1.xpose.msra.mxu0 0.0
    %698 = vmatprep.subr.mxu0 0.0
    %699 = vmatpush1.xpose.msra.mxu0 0.0
    %700 = vmatprep.subr.mxu0 0.0
    %701 = vmatpush1.xpose.msra.mxu0 0.0
    %702 = vmatprep.subr.mxu0 0.0
    %703 = vmatpush1.xpose.msra.mxu0 0.0
    %704 = vmatprep.subr.mxu0 0.0
    %705 = vmatpush1.xpose.msra.mxu0 0.0
    %706 = vmatprep.subr.mxu0 0.0
    %707 = vmatpush1.xpose.msra.mxu0 0.0
    %708 = vmatprep.subr.mxu0 0.0
    %709 = vmatpush1.xpose.msra.mxu0 0.0
    %710 = vmatprep.subr.mxu0 0.0
    %711 = vmatpush1.xpose.msra.mxu0 0.0
    %712 = vmatprep.subr.mxu0 0.0
    %713 = vmatpush1.xpose.msra.mxu0 0.0
    %714 = vmatprep.subr.mxu0 0.0
    %715 = vmatpush1.xpose.msra.mxu0 0.0
    %716 = vmatprep.subr.mxu0 0.0
    %717 = vmatpush1.xpose.msra.mxu0 0.0
    %718 = vmatprep.subr.mxu0 0.0
    %719 = vmatpush1.xpose.msra.mxu0 0.0
    %720 = vmatprep.subr.mxu0 0.0
    %721 = vmatpush1.xpose.msra.mxu0 0.0
    %722 = vmatprep.subr.mxu0 0.0
    %723 = vmatpush1.xpose.msra.mxu0 0.0
    %724 = vmatprep.subr.mxu0 0.0
    %725 = vmatpush1.xpose.msra.mxu0 0.0
    %726 = vmatprep.subr.mxu0 0.0
    %727 = vmatpush1.xpose.msra.mxu0 0.0
    %728 = vmatprep.subr.mxu0 0.0
    %729 = vmatpush1.xpose.msra.mxu0 0.0
    %730 = vmatprep.subr.mxu0 0.0
    %731 = vmatpush1.xpose.msra.mxu0 0.0
    %732 = vmatprep.subr.mxu0 0.0
    %733 = vmatpush1.xpose.msra.mxu0 0.0
    %734 = vmatprep.subr.mxu0 0.0
    %735 = vmatpush1.xpose.msra.mxu0 0.0
    %736 = vmatprep.subr.mxu0 0.0
    %737 = vmatpush1.xpose.msra.mxu0 0.0
    %738 = vmatprep.subr.mxu0 0.0
    %739 = vmatpush1.xpose.msra.mxu0 0.0
    %740 = vmatprep.mubr.f32.mxu0 0.0
    %741 = vmatmul.mubr.f32.gmra.mrb[0].mxu0 %v670
    %v742 = vpop.f32.mrb[0].mxu0
    %v743 = vadd.f32 %v588, %v742
    %v744 = vpop.f32.mrb[0].mxu0
    %745 = vdwg.mxu0
    %vm746 = vcmask 125952
    %v747 = vsel %vm746, %v665, -inf
    %748 = vmax.xlane.f32.xlu0 %v747
    %v749 = vpop.xlane.xlu0 %748
    %v750 = vsel %vm746, %v743, -inf
    %751 = vmax.xlane.f32.xlu0 %v750
    %v752 = vpop.xlane.xlu0 %751
    %v753 = vsub.f32 %v665, %v749
    %v754 = vsub.f32 %v743, %v752
    %v755 = vmul.f32 %v753, 1.442695
    %v756 = vpow.pop %v755
    %v757 = vmul.f32 %v754, 1.442695
    %v758 = vpow.pop %v757
    %v759 = vsel %vm746, %v756, 0.0
    %760 = vadd.xlane.f32.xlu0 %v759
    %v761 = vpop.xlane.xlu0 %760
    %v762 = vsel %vm746, %v758, 0.0
    %763 = vadd.xlane.f32.xlu0 %v762
    %v764 = vpop.xlane.xlu0 %763
    %v765 = vrcp.pop %v761
    %v766 = vrcp.pop %v764
    %v767 = vmul.f32 %v756, %v765
    %v768 = vmul.f32 %v758, %v766
    %vm769 = vcmask 130048
    %v771 = vsel %vm769, %v767, 0
    %773 = vmatprep.subr.mxu0 0.0
    %774 = vmatpush1.msra.mxu0 %v533
    %775 = vmatprep.subr.mxu0 0.0
    %776 = vmatpush1.msra.mxu0 %v535
    %777 = vmatprep.subr.mxu0 0.0
    %778 = vmatpush1.msra.mxu0 0.0
    %779 = vmatprep.subr.mxu0 0.0
    %780 = vmatpush1.msra.mxu0 0.0
    %781 = vmatprep.subr.mxu0 0.0
    %782 = vmatpush1.msra.mxu0 0.0
    %783 = vmatprep.subr.mxu0 0.0
    %784 = vmatpush1.msra.mxu0 0.0
    %785 = vmatprep.subr.mxu0 0.0
    %786 = vmatpush1.msra.mxu0 0.0
    %787 = vmatprep.subr.mxu0 0.0
    %788 = vmatpush1.msra.mxu0 0.0
    %789 = vmatprep.subr.mxu0 0.0
    %790 = vmatpush1.msra.mxu0 0.0
    %791 = vmatprep.subr.mxu0 0.0
    %792 = vmatpush1.msra.mxu0 0.0
    %793 = vmatprep.subr.mxu0 0.0
    %794 = vmatpush1.msra.mxu0 0.0
    %795 = vmatprep.subr.mxu0 0.0
    %796 = vmatpush1.msra.mxu0 0.0
    %797 = vmatprep.subr.mxu0 0.0
    %798 = vmatpush1.msra.mxu0 0.0
    %799 = vmatprep.subr.mxu0 0.0
    %800 = vmatpush1.msra.mxu0 0.0
    %801 = vmatprep.subr.mxu0 0.0
    %802 = vmatpush1.msra.mxu0 0.0
    %803 = vmatprep.subr.mxu0 0.0
    %804 = vmatpush1.msra.mxu0 0.0
    %805 = vmatprep.subr.mxu0 0.0
    %806 = vmatpush1.msra.mxu0 0.0
    %807 = vmatprep.subr.mxu0 0.0
    %808 = vmatpush1.msra.mxu0 0.0
    %809 = vmatprep.subr.mxu0 0.0
    %810 = vmatpush1.msra.mxu0 0.0
    %811 = vmatprep.subr.mxu0 0.0
    %812 = vmatpush1.msra.mxu0 0.0
    %813 = vmatprep.subr.mxu0 0.0
    %814 = vmatpush1.msra.mxu0 0.0
    %815 = vmatprep.subr.mxu0 0.0
    %816 = vmatpush1.msra.mxu0 0.0
    %817 = vmatprep.subr.mxu0 0.0
    %818 = vmatpush1.msra.mxu0 0.0
    %819 = vmatprep.subr.mxu0 0.0
    %820 = vmatpush1.msra.mxu0 0.0
    %821 = vmatprep.subr.mxu0 0.0
    %822 = vmatpush1.msra.mxu0 0.0
    %823 = vmatprep.subr.mxu0 0.0
    %824 = vmatpush1.msra.mxu0 0.0
    %825 = vmatprep.subr.mxu0 0.0
    %826 = vmatpush1.msra.mxu0 0.0
    %827 = vmatprep.subr.mxu0 0.0
    %828 = vmatpush1.msra.mxu0 0.0
    %829 = vmatprep.subr.mxu0 0.0
    %830 = vmatpush1.msra.mxu0 0.0
    %831 = vmatprep.subr.mxu0 0.0
    %832 = vmatpush1.msra.mxu0 0.0
    %833 = vmatprep.subr.mxu0 0.0
    %834 = vmatpush1.msra.mxu0 0.0
    %835 = vmatprep.subr.mxu0 0.0
    %836 = vmatpush1.msra.mxu0 0.0
    %837 = vmatprep.mubr.f32.mxu0 0.0
    %838 = vmatmul.mubr.f32.gmra.mrb[0].mxu0 %v771
    %v839 = vpop.f32.mrb[0].mxu0
    %v840 = vadd.f32 0.0, %v839
    %v841 = vpop.f32.mrb[0].mxu0
    %842 = vdwg.mxu0
    %v844 = vsel %vm769, %v768, 0
    %846 = vmatprep.subr.mxu0 0.0
    %847 = vmatpush1.msra.mxu0 %v537
    %848 = vmatprep.subr.mxu0 0.0
    %849 = vmatpush1.msra.mxu0 %v539
    %850 = vmatprep.subr.mxu0 0.0
    %851 = vmatpush1.msra.mxu0 0.0
    %852 = vmatprep.subr.mxu0 0.0
    %853 = vmatpush1.msra.mxu0 0.0
    %854 = vmatprep.subr.mxu0 0.0
    %855 = vmatpush1.msra.mxu0 0.0
    %856 = vmatprep.subr.mxu0 0.0
    %857 = vmatpush1.msra.mxu0 0.0
    %858 = vmatprep.subr.mxu0 0.0
    %859 = vmatpush1.msra.mxu0 0.0
    %860 = vmatprep.subr.mxu0 0.0
    %861 = vmatpush1.msra.mxu0 0.0
    %862 = vmatprep.subr.mxu0 0.0
    %863 = vmatpush1.msra.mxu0 0.0
    %864 = vmatprep.subr.mxu0 0.0
    %865 = vmatpush1.msra.mxu0 0.0
    %866 = vmatprep.subr.mxu0 0.0
    %867 = vmatpush1.msra.mxu0 0.0
    %868 = vmatprep.subr.mxu0 0.0
    %869 = vmatpush1.msra.mxu0 0.0
    %870 = vmatprep.subr.mxu0 0.0
    %871 = vmatpush1.msra.mxu0 0.0
    %872 = vmatprep.subr.mxu0 0.0
    %873 = vmatpush1.msra.mxu0 0.0
    %874 = vmatprep.subr.mxu0 0.0
    %875 = vmatpush1.msra.mxu0 0.0
    %876 = vmatprep.subr.mxu0 0.0
    %877 = vmatpush1.msra.mxu0 0.0
    %878 = vmatprep.subr.mxu0 0.0
    %879 = vmatpush1.msra.mxu0 0.0
    %880 = vmatprep.subr.mxu0 0.0
    %881 = vmatpush1.msra.mxu0 0.0
    %882 = vmatprep.subr.mxu0 0.0
    %883 = vmatpush1.msra.mxu0 0.0
    %884 = vmatprep.subr.mxu0 0.0
    %885 = vmatpush1.msra.mxu0 0.0
    %886 = vmatprep.subr.mxu0 0.0
    %887 = vmatpush1.msra.mxu0 0.0
    %888 = vmatprep.subr.mxu0 0.0
    %889 = vmatpush1.msra.mxu0 0.0
    %890 = vmatprep.subr.mxu0 0.0
    %891 = vmatpush1.msra.mxu0 0.0
    %892 = vmatprep.subr.mxu0 0.0
    %893 = vmatpush1.msra.mxu0 0.0
    %894 = vmatprep.subr.mxu0 0.0
    %895 = vmatpush1.msra.mxu0 0.0
    %896 = vmatprep.subr.mxu0 0.0
    %897 = vmatpush1.msra.mxu0 0.0
    %898 = vmatprep.subr.mxu0 0.0
    %899 = vmatpush1.msra.mxu0 0.0
    %900 = vmatprep.subr.mxu0 0.0
    %901 = vmatpush1.msra.mxu0 0.0
    %902 = vmatprep.subr.mxu0 0.0
    %903 = vmatpush1.msra.mxu0 0.0
    %904 = vmatprep.subr.mxu0 0.0
    %905 = vmatpush1.msra.mxu0 0.0
    %906 = vmatprep.subr.mxu0 0.0
    %907 = vmatpush1.msra.mxu0 0.0
    %908 = vmatprep.subr.mxu0 0.0
    %909 = vmatpush1.msra.mxu0 0.0
    %910 = vmatprep.mubr.f32.mxu0 0.0
    %911 = vmatmul.mubr.f32.gmra.mrb[0].mxu0 %v844
    %v912 = vpop.f32.mrb[0].mxu0
    %v913 = vadd.f32 0.0, %v912
    %v914 = vpop.f32.mrb[0].mxu0
    %915 = vdwg.mxu0
    %v917 = vrot.slane %v146, 4
    %v919 = vmul.f32 %v840, %v917
    %v920 = vmul.f32 %v913, %v917
    %vm921 = vcmask 257024
    %v922 = vsel %vm921, %v919, 0.0
    %v923 = vrot.slane %v922, 4
    %v924 = vadd.f32 %v922, %v923
    %v925 = vrot.slane %v924, 2
    %v926 = vadd.f32 %v924, %v925
    %v927 = vrot.slane %v926, 1
    %v928 = vadd.f32 %v926, %v927
    %v929 = vsel %vm921, %v920, 0.0
    %v930 = vrot.slane %v929, 4
    %v931 = vadd.f32 %v929, %v930
    %v932 = vrot.slane %v931, 2
    %v933 = vadd.f32 %v931, %v932
    %v934 = vrot.slane %v933, 1
    %v935 = vadd.f32 %v933, %v934
    %v936 = vpack.c.bf16 %v928, %v928
    %v937 = vpack.c.bf16 %v935, %v935
    %v940 = vunpack.c.l.b16 %v936
    %v941 = vunpack.c.l.b16 %v937
    %v942 = vsel %vm295, %v941, %v940
    %v943 = vpack.c.b16 %v942, %v942
    %v948 = vunpack.c.l.b16 %v125
    %v949 = vunpack.c.l.b16 %v126
    %v950 = vunpack.c.l.b16 %v127
    %v951 = vunpack.c.l.b16 %v128
    %v952 = vpack.c.b16 %v949, %v948
    %v953 = vpack.c.b16 %v951, %v950
    %v957 = vsel %vm310, %v943, 0
    %959 = vmatprep.subr.bf16.mxu0 0
    %960 = vmatpush1.bf16.msra.mxu0 %v952
    %961 = vmatprep.subr.bf16.mxu0 0
    %962 = vmatpush1.bf16.msra.mxu0 %v953
    %963 = vmatprep.subr.bf16.mxu0 0
    %964 = vmatpush1.bf16.msra.mxu0 0
    %965 = vmatprep.subr.bf16.mxu0 0
    %966 = vmatpush1.bf16.msra.mxu0 0
    %967 = vmatprep.subr.bf16.mxu0 0
    %968 = vmatpush1.bf16.msra.mxu0 0
    %969 = vmatprep.subr.bf16.mxu0 0
    %970 = vmatpush1.bf16.msra.mxu0 0
    %971 = vmatprep.subr.bf16.mxu0 0
    %972 = vmatpush1.bf16.msra.mxu0 0
    %973 = vmatprep.subr.bf16.mxu0 0
    %974 = vmatpush1.bf16.msra.mxu0 0
    %975 = vmatprep.subr.bf16.mxu0 0
    %976 = vmatpush1.bf16.msra.mxu0 0
    %977 = vmatprep.subr.bf16.mxu0 0
    %978 = vmatpush1.bf16.msra.mxu0 0
    %979 = vmatprep.subr.bf16.mxu0 0
    %980 = vmatpush1.bf16.msra.mxu0 0
    %981 = vmatprep.subr.bf16.mxu0 0
    %982 = vmatpush1.bf16.msra.mxu0 0
    %983 = vmatprep.subr.bf16.mxu0 0
    %984 = vmatpush1.bf16.msra.mxu0 0
    %985 = vmatprep.subr.bf16.mxu0 0
    %986 = vmatpush1.bf16.msra.mxu0 0
    %987 = vmatprep.subr.bf16.mxu0 0
    %988 = vmatpush1.bf16.msra.mxu0 0
    %989 = vmatprep.subr.bf16.mxu0 0
    %990 = vmatpush1.bf16.msra.mxu0 0
    %991 = vmatprep.mubr.bf16.mxu0 0
    %992 = vmatmul.mubr.bf16.gmra.mrb[0].mxu0 %v957
    %v993 = vpop.f32.mrb[0].mxu0
    %v994 = vadd.f32 0.0, %v993
    %v995 = vpop.f32.mrb[0].mxu0
    %v996 = vpop.f32.mrb[0].mxu0
    %v997 = vpop.f32.mrb[0].mxu0
    %998 = vdwg.mxu0
    %v1001 = vunpack.c.l.s4 1966171168
    %v1002 = vunpack.c.0.s8 %v1001
    %v1003 = vlaneseq
    %v1004 = vshrl.u32 %v1003, 7
    %v1005 = vsub.s32 %v1002, %v1004
    %v1006 = vrot.slane %v994, %v1005
    %v1007 = vcombine.high %v1006, %v1006
    %v1009 = vunpack.c.l.s4 1966171168
    %v1010 = vunpack.c.0.s8 %v1009
    %v1011 = vlaneseq
    %v1012 = vshrl.u32 %v1011, 7
    %v1013 = vsub.s32 %v1010, %v1012
    %v1014 = vrot.slane %v1006, %v1013
    %v1016 = vunpack.c.l.s4 1966171168
    %v1017 = vunpack.c.0.s8 %v1016
    %v1018 = vlaneseq
    %v1019 = vshrl.u32 %v1018, 7
    %v1020 = vsub.s32 %v1017, %v1019
    %v1021 = vrot.slane %v1007, %v1020
    %v1024 = vadd.f32 %v148, %v1014
    %v1025 = vadd.f32 %v149, %v1021
    %v1026 = vlaneseq
    %v1027 = vshrl.u32 %v1026, 7
    %v1028 = vsub.s32 4, %v1027
    %v1029 = vrot.slane %v145, %v1028
    %v1032 = vunpack.c.l.s4 1966171168
    %v1033 = vunpack.c.0.s8 %v1032
    %v1034 = vlaneseq
    %v1035 = vshrl.u32 %v1034, 7
    %v1036 = vsub.s32 %v1033, %v1035
    %v1037 = vrot.slane %v1029, %v1036
    %v1038 = vcombine.high %v1037, %v1037
    %v1040 = vunpack.c.l.s4 1966171168
    %v1041 = vunpack.c.0.s8 %v1040
    %v1042 = vlaneseq
    %v1043 = vshrl.u32 %v1042, 7
    %v1044 = vsub.s32 %v1041, %v1043
    %v1045 = vrot.slane %v1037, %v1044
    %v1047 = vunpack.c.l.s4 1966171168
    %v1048 = vunpack.c.0.s8 %v1047
    %v1049 = vlaneseq
    %v1050 = vshrl.u32 %v1049, 7
    %v1051 = vsub.s32 %v1048, %v1050
    %v1052 = vrot.slane %v1038, %v1051
    %v1055 = vadd.f32 %v1024, %v1045
    %v1056 = vadd.f32 %v1025, %v1052
    %v1059 = vcombine.low %v1055, %v1056
    %v1061 = vunpack.c.l.s4 1966171168
    %v1062 = vunpack.c.0.s8 %v1061
    %v1063 = vlaneseq
    %v1064 = vshrl.u32 %v1063, 7
    %v1065 = vsub.s32 %v1062, %v1064
    %v1066 = vrot.slane %v1059, %v1065
    %v1068 = vunpack.c.l.s4 1966171168
    %v1069 = vunpack.c.0.s8 %v1068
    %v1070 = vlaneseq
    %v1071 = vshrl.u32 %v1070, 7
    %v1072 = vsub.s32 %v1069, %v1071
    %v1073 = vrot.slane %v1066, %v1072
    %v1075 = vsel %vm168, %v1073, 0.0
    %1076 = vadd.xlane.f32.xlu0 %v1075
    %v1077 = vpop.xlane.xlu0 %1076
    %v1078 = vmul.f32 %v1077, %v172
    %v1080 = vlaneseq
    %v1081 = vshrl.u32 %v1080, 7
    %v1082 = vsub.s32 0, %v1081
    %v1083 = vrot.slane %v1078, %v1082
    %v1084 = vlaneseq
    %v1085 = vshrl.u32 %v1084, 7
    %v1086 = vsub.s32 1, %v1085
    %v1087 = vrot.slane %v1078, %v1086
    %v1090 = vsub.f32 %v1055, %v1083
    %v1091 = vsub.f32 %v1056, %v1087
    %v1092 = vmul.f32 %v1090, %v1090
    %v1093 = vmul.f32 %v1091, %v1091
    %v1096 = vcombine.low %v1092, %v1093
    %v1098 = vunpack.c.l.s4 1966171168
    %v1099 = vunpack.c.0.s8 %v1098
    %v1100 = vlaneseq
    %v1101 = vshrl.u32 %v1100, 7
    %v1102 = vsub.s32 %v1099, %v1101
    %v1103 = vrot.slane %v1096, %v1102
    %v1105 = vunpack.c.l.s4 1966171168
    %v1106 = vunpack.c.0.s8 %v1105
    %v1107 = vlaneseq
    %v1108 = vshrl.u32 %v1107, 7
    %v1109 = vsub.s32 %v1106, %v1108
    %v1110 = vrot.slane %v1103, %v1109
    %v1112 = vsel %vm168, %v1110, 0.0
    %1113 = vadd.xlane.f32.xlu0 %v1112
    %v1114 = vpop.xlane.xlu0 %1113
    %v1115 = vmul.f32 %v1114, %v172
    %v1116 = vadd.f32 %v1115, 1e-05
    %v1117 = vrsqrt.pop %v1116
    %v1119 = vlaneseq
    %v1120 = vshrl.u32 %v1119, 7
    %v1121 = vsub.s32 0, %v1120
    %v1122 = vrot.slane %v1117, %v1121
    %v1123 = vlaneseq
    %v1124 = vshrl.u32 %v1123, 7
    %v1125 = vsub.s32 1, %v1124
    %v1126 = vrot.slane %v1117, %v1125
    %v1129 = vmul.f32 %v1090, %v1122
    %v1130 = vmul.f32 %v1091, %v1126
    %v1131 = vlaneseq
    %v1132 = vshrl.u32 %v1131, 7
    %v1133 = vsub.s32 5, %v1132
    %v1134 = vrot.slane %v145, %v1133
    %v1137 = vunpack.c.l.s4 1966171168
    %v1138 = vunpack.c.0.s8 %v1137
    %v1139 = vlaneseq
    %v1140 = vshrl.u32 %v1139, 7
    %v1141 = vsub.s32 %v1138, %v1140
    %v1142 = vrot.slane %v1134, %v1141
    %v1143 = vcombine.high %v1142, %v1142
    %v1145 = vunpack.c.l.s4 1966171168
    %v1146 = vunpack.c.0.s8 %v1145
    %v1147 = vlaneseq
    %v1148 = vshrl.u32 %v1147, 7
    %v1149 = vsub.s32 %v1146, %v1148
    %v1150 = vrot.slane %v1142, %v1149
    %v1152 = vunpack.c.l.s4 1966171168
    %v1153 = vunpack.c.0.s8 %v1152
    %v1154 = vlaneseq
    %v1155 = vshrl.u32 %v1154, 7
    %v1156 = vsub.s32 %v1153, %v1155
    %v1157 = vrot.slane %v1143, %v1156
    %v1160 = vmul.f32 %v1129, %v1150
    %v1161 = vmul.f32 %v1130, %v1157
    %v1162 = vlaneseq
    %v1163 = vshrl.u32 %v1162, 7
    %v1164 = vsub.s32 6, %v1163
    %v1165 = vrot.slane %v145, %v1164
    %v1168 = vunpack.c.l.s4 1966171168
    %v1169 = vunpack.c.0.s8 %v1168
    %v1170 = vlaneseq
    %v1171 = vshrl.u32 %v1170, 7
    %v1172 = vsub.s32 %v1169, %v1171
    %v1173 = vrot.slane %v1165, %v1172
    %v1174 = vcombine.high %v1173, %v1173
    %v1176 = vunpack.c.l.s4 1966171168
    %v1177 = vunpack.c.0.s8 %v1176
    %v1178 = vlaneseq
    %v1179 = vshrl.u32 %v1178, 7
    %v1180 = vsub.s32 %v1177, %v1179
    %v1181 = vrot.slane %v1173, %v1180
    %v1183 = vunpack.c.l.s4 1966171168
    %v1184 = vunpack.c.0.s8 %v1183
    %v1185 = vlaneseq
    %v1186 = vshrl.u32 %v1185, 7
    %v1187 = vsub.s32 %v1184, %v1186
    %v1188 = vrot.slane %v1174, %v1187
    %v1191 = vadd.f32 %v1160, %v1181
    %v1192 = vadd.f32 %v1161, %v1188
    %v1193 = vpack.c.bf16 %v1191, %v1191
    %v1194 = vpack.c.bf16 %v1192, %v1192
    %v1195 = vlaneseq
    %v1196 = vshrl.u32 %v1195, 7
    %v1197 = vsub.s32 7, %v1196
    %v1198 = vrot.slane %v145, %v1197
    %v1201 = vunpack.c.l.b16 %v1193
    %v1202 = vunpack.c.l.b16 %v1194
    %v1203 = vrot.slane %v1202, 7
    %v1204 = vsel %vm295, %v1203, %v1201
    %v1205 = vpack.c.b16 %v1204, %v1204
    %1206 = vrot.lane.b32.xlu0 %v952, 96
    %v1207 = vpop.permute.xlu0 %1206
    %1208 = vrot.lane.b32.xlu0 %v953, 96
    %v1209 = vpop.permute.xlu0 %1208
    %v1213 = vsel %vm310, %v1205, 0
    %1215 = vmatprep.subr.bf16.mxu0 0
    %1216 = vmatpush1.bf16.msra.mxu0 %v1207
    %1217 = vmatprep.subr.bf16.mxu0 0
    %1218 = vmatpush1.bf16.msra.mxu0 %v1209
    %1219 = vmatprep.subr.bf16.mxu0 0
    %1220 = vmatpush1.bf16.msra.mxu0 0
    %1221 = vmatprep.subr.bf16.mxu0 0
    %1222 = vmatpush1.bf16.msra.mxu0 0
    %1223 = vmatprep.subr.bf16.mxu0 0
    %1224 = vmatpush1.bf16.msra.mxu0 0
    %1225 = vmatprep.subr.bf16.mxu0 0
    %1226 = vmatpush1.bf16.msra.mxu0 0
    %1227 = vmatprep.subr.bf16.mxu0 0
    %1228 = vmatpush1.bf16.msra.mxu0 0
    %1229 = vmatprep.subr.bf16.mxu0 0
    %1230 = vmatpush1.bf16.msra.mxu0 0
    %1231 = vmatprep.subr.bf16.mxu0 0
    %1232 = vmatpush1.bf16.msra.mxu0 0
    %1233 = vmatprep.subr.bf16.mxu0 0
    %1234 = vmatpush1.bf16.msra.mxu0 0
    %1235 = vmatprep.subr.bf16.mxu0 0
    %1236 = vmatpush1.bf16.msra.mxu0 0
    %1237 = vmatprep.subr.bf16.mxu0 0
    %1238 = vmatpush1.bf16.msra.mxu0 0
    %1239 = vmatprep.subr.bf16.mxu0 0
    %1240 = vmatpush1.bf16.msra.mxu0 0
    %1241 = vmatprep.subr.bf16.mxu0 0
    %1242 = vmatpush1.bf16.msra.mxu0 0
    %1243 = vmatprep.subr.bf16.mxu0 0
    %1244 = vmatpush1.bf16.msra.mxu0 0
    %1245 = vmatprep.subr.bf16.mxu0 0
    %1246 = vmatpush1.bf16.msra.mxu0 0
    %1247 = vmatprep.mubr.bf16.mxu0 0
    %1248 = vmatmul.mubr.bf16.gmra.mrb[0].mxu0 %v1213
    %v1249 = vpop.f32.mrb[0].mxu0
    %v1250 = vadd.f32 %v1198, %v1249
    %v1251 = vpop.f32.mrb[0].mxu0
    %v1252 = vpop.f32.mrb[0].mxu0
    %v1253 = vpop.f32.mrb[0].mxu0
    %1254 = vdwg.mxu0
    %v1255 = vld [vmem:[#allocation8] sm:$0xff]
    %v1256 = vld [vmem:[#allocation8 + $0x8] sm:$0xff]
    %v1257 = vld [vmem:[#allocation10] sm:$0xff]
    %v1258 = vld [vmem:[#allocation10 + $0x8] sm:$0xff]
    %v1261 = vunpack.c.l.s4 1966171168
    %v1262 = vunpack.c.0.s8 %v1261
    %v1263 = vlaneseq
    %v1264 = vshrl.u32 %v1263, 7
    %v1265 = vsub.s32 %v1262, %v1264
    %v1266 = vrot.slane %v1250, %v1265
    %v1267 = vcombine.high %v1266, %v1266
    %v1269 = vunpack.c.l.s4 1966171168
    %v1270 = vunpack.c.0.s8 %v1269
    %v1271 = vlaneseq
    %v1272 = vshrl.u32 %v1271, 7
    %v1273 = vsub.s32 %v1270, %v1272
    %v1274 = vrot.slane %v1266, %v1273
    %v1276 = vunpack.c.l.s4 1966171168
    %v1277 = vunpack.c.0.s8 %v1276
    %v1278 = vlaneseq
    %v1279 = vshrl.u32 %v1278, 7
    %v1280 = vsub.s32 %v1277, %v1279
    %v1281 = vrot.slane %v1267, %v1280
    %v1282 = vlaneseq
    %v1283 = vshrl.u32 %v1282, 7
    %v1284 = vsub.s32 0, %v1283
    %v1285 = vrot.slane %v1274, %v1284
    %v1286 = vlaneseq
    %v1287 = vshrl.u32 %v1286, 7
    %v1288 = vsub.s32 0, %v1287
    %v1289 = vrot.slane %v1281, %v1288
    %v1292 = vmul.f32 %v1285, %v146
    %v1293 = vmul.f32 %v1289, %v146
    %v1295 = vrot.slane %v1292, 4
    %v1296 = vsel %vm310, %v1295, 0
    %v1299 = vsel %vm310, %v1255, 0
    %1301 = vmatprep.subr.mxu0 0.0
    %1302 = vmatpush1.xpose.msra.mxu0 %v1299
    %1303 = vmatprep.subr.mxu0 0.0
    %1304 = vmatpush1.xpose.msra.mxu0 0.0
    %1305 = vmatprep.subr.mxu0 0.0
    %1306 = vmatpush1.xpose.msra.mxu0 0.0
    %1307 = vmatprep.subr.mxu0 0.0
    %1308 = vmatpush1.xpose.msra.mxu0 0.0
    %1309 = vmatprep.subr.mxu0 0.0
    %1310 = vmatpush1.xpose.msra.mxu0 0.0
    %1311 = vmatprep.subr.mxu0 0.0
    %1312 = vmatpush1.xpose.msra.mxu0 0.0
    %1313 = vmatprep.subr.mxu0 0.0
    %1314 = vmatpush1.xpose.msra.mxu0 0.0
    %1315 = vmatprep.subr.mxu0 0.0
    %1316 = vmatpush1.xpose.msra.mxu0 0.0
    %1317 = vmatprep.subr.mxu0 0.0
    %1318 = vmatpush1.xpose.msra.mxu0 0.0
    %1319 = vmatprep.subr.mxu0 0.0
    %1320 = vmatpush1.xpose.msra.mxu0 0.0
    %1321 = vmatprep.subr.mxu0 0.0
    %1322 = vmatpush1.xpose.msra.mxu0 0.0
    %1323 = vmatprep.subr.mxu0 0.0
    %1324 = vmatpush1.xpose.msra.mxu0 0.0
    %1325 = vmatprep.subr.mxu0 0.0
    %1326 = vmatpush1.xpose.msra.mxu0 0.0
    %1327 = vmatprep.subr.mxu0 0.0
    %1328 = vmatpush1.xpose.msra.mxu0 0.0
    %1329 = vmatprep.subr.mxu0 0.0
    %1330 = vmatpush1.xpose.msra.mxu0 0.0
    %1331 = vmatprep.subr.mxu0 0.0
    %1332 = vmatpush1.xpose.msra.mxu0 0.0
    %1333 = vmatprep.subr.mxu0 0.0
    %1334 = vmatpush1.xpose.msra.mxu0 0.0
    %1335 = vmatprep.subr.mxu0 0.0
    %1336 = vmatpush1.xpose.msra.mxu0 0.0
    %1337 = vmatprep.subr.mxu0 0.0
    %1338 = vmatpush1.xpose.msra.mxu0 0.0
    %1339 = vmatprep.subr.mxu0 0.0
    %1340 = vmatpush1.xpose.msra.mxu0 0.0
    %1341 = vmatprep.subr.mxu0 0.0
    %1342 = vmatpush1.xpose.msra.mxu0 0.0
    %1343 = vmatprep.subr.mxu0 0.0
    %1344 = vmatpush1.xpose.msra.mxu0 0.0
    %1345 = vmatprep.subr.mxu0 0.0
    %1346 = vmatpush1.xpose.msra.mxu0 0.0
    %1347 = vmatprep.subr.mxu0 0.0
    %1348 = vmatpush1.xpose.msra.mxu0 0.0
    %1349 = vmatprep.subr.mxu0 0.0
    %1350 = vmatpush1.xpose.msra.mxu0 0.0
    %1351 = vmatprep.subr.mxu0 0.0
    %1352 = vmatpush1.xpose.msra.mxu0 0.0
    %1353 = vmatprep.subr.mxu0 0.0
    %1354 = vmatpush1.xpose.msra.mxu0 0.0
    %1355 = vmatprep.subr.mxu0 0.0
    %1356 = vmatpush1.xpose.msra.mxu0 0.0
    %1357 = vmatprep.subr.mxu0 0.0
    %1358 = vmatpush1.xpose.msra.mxu0 0.0
    %1359 = vmatprep.subr.mxu0 0.0
    %1360 = vmatpush1.xpose.msra.mxu0 0.0
    %1361 = vmatprep.subr.mxu0 0.0
    %1362 = vmatpush1.xpose.msra.mxu0 0.0
    %1363 = vmatprep.subr.mxu0 0.0
    %1364 = vmatpush1.xpose.msra.mxu0 0.0
    %1365 = vmatprep.mubr.f32.mxu0 0.0
    %1366 = vmatmul.mubr.f32.gmra.mrb[0].mxu0 %v1296
    %v1367 = vpop.f32.mrb[0].mxu0
    %v1368 = vadd.f32 0.0, %v1367
    %v1369 = vpop.f32.mrb[0].mxu0
    %1370 = vdwg.mxu0
    %v1372 = vrot.slane %v1293, 4
    %v1373 = vsel %vm310, %v1372, 0
    %v1376 = vsel %vm310, %v1256, 0
    %1378 = vmatprep.subr.mxu0 0.0
    %1379 = vmatpush1.xpose.msra.mxu0 %v1376
    %1380 = vmatprep.subr.mxu0 0.0
    %1381 = vmatpush1.xpose.msra.mxu0 0.0
    %1382 = vmatprep.subr.mxu0 0.0
    %1383 = vmatpush1.xpose.msra.mxu0 0.0
    %1384 = vmatprep.subr.mxu0 0.0
    %1385 = vmatpush1.xpose.msra.mxu0 0.0
    %1386 = vmatprep.subr.mxu0 0.0
    %1387 = vmatpush1.xpose.msra.mxu0 0.0
    %1388 = vmatprep.subr.mxu0 0.0
    %1389 = vmatpush1.xpose.msra.mxu0 0.0
    %1390 = vmatprep.subr.mxu0 0.0
    %1391 = vmatpush1.xpose.msra.mxu0 0.0
    %1392 = vmatprep.subr.mxu0 0.0
    %1393 = vmatpush1.xpose.msra.mxu0 0.0
    %1394 = vmatprep.subr.mxu0 0.0
    %1395 = vmatpush1.xpose.msra.mxu0 0.0
    %1396 = vmatprep.subr.mxu0 0.0
    %1397 = vmatpush1.xpose.msra.mxu0 0.0
    %1398 = vmatprep.subr.mxu0 0.0
    %1399 = vmatpush1.xpose.msra.mxu0 0.0
    %1400 = vmatprep.subr.mxu0 0.0
    %1401 = vmatpush1.xpose.msra.mxu0 0.0
    %1402 = vmatprep.subr.mxu0 0.0
    %1403 = vmatpush1.xpose.msra.mxu0 0.0
    %1404 = vmatprep.subr.mxu0 0.0
    %1405 = vmatpush1.xpose.msra.mxu0 0.0
    %1406 = vmatprep.subr.mxu0 0.0
    %1407 = vmatpush1.xpose.msra.mxu0 0.0
    %1408 = vmatprep.subr.mxu0 0.0
    %1409 = vmatpush1.xpose.msra.mxu0 0.0
    %1410 = vmatprep.subr.mxu0 0.0
    %1411 = vmatpush1.xpose.msra.mxu0 0.0
    %1412 = vmatprep.subr.mxu0 0.0
    %1413 = vmatpush1.xpose.msra.mxu0 0.0
    %1414 = vmatprep.subr.mxu0 0.0
    %1415 = vmatpush1.xpose.msra.mxu0 0.0
    %1416 = vmatprep.subr.mxu0 0.0
    %1417 = vmatpush1.xpose.msra.mxu0 0.0
    %1418 = vmatprep.subr.mxu0 0.0
    %1419 = vmatpush1.xpose.msra.mxu0 0.0
    %1420 = vmatprep.subr.mxu0 0.0
    %1421 = vmatpush1.xpose.msra.mxu0 0.0
    %1422 = vmatprep.subr.mxu0 0.0
    %1423 = vmatpush1.xpose.msra.mxu0 0.0
    %1424 = vmatprep.subr.mxu0 0.0
    %1425 = vmatpush1.xpose.msra.mxu0 0.0
    %1426 = vmatprep.subr.mxu0 0.0
    %1427 = vmatpush1.xpose.msra.mxu0 0.0
    %1428 = vmatprep.subr.mxu0 0.0
    %1429 = vmatpush1.xpose.msra.mxu0 0.0
    %1430 = vmatprep.subr.mxu0 0.0
    %1431 = vmatpush1.xpose.msra.mxu0 0.0
    %1432 = vmatprep.subr.mxu0 0.0
    %1433 = vmatpush1.xpose.msra.mxu0 0.0
    %1434 = vmatprep.subr.mxu0 0.0
    %1435 = vmatpush1.xpose.msra.mxu0 0.0
    %1436 = vmatprep.subr.mxu0 0.0
    %1437 = vmatpush1.xpose.msra.mxu0 0.0
    %1438 = vmatprep.subr.mxu0 0.0
    %1439 = vmatpush1.xpose.msra.mxu0 0.0
    %1440 = vmatprep.subr.mxu0 0.0
    %1441 = vmatpush1.xpose.msra.mxu0 0.0
    %1442 = vmatprep.mubr.f32.mxu0 0.0
    %1443 = vmatmul.mubr.f32.gmra.mrb[0].mxu0 %v1373
    %v1444 = vpop.f32.mrb[0].mxu0
    %v1445 = vadd.f32 0.0, %v1444
    %v1446 = vpop.f32.mrb[0].mxu0
    %1447 = vdwg.mxu0
    %vm1448 = vcmask 60416
    %v1449 = vsel %vm1448, %v1368, -inf
    %1450 = vmax.xlane.f32.xlu0 %v1449
    %v1451 = vpop.xlane.xlu0 %1450
    %v1452 = vsel %vm1448, %v1445, -inf
    %1453 = vmax.xlane.f32.xlu0 %v1452
    %v1454 = vpop.xlane.xlu0 %1453
    %v1455 = vsub.f32 %v1368, %v1451
    %v1456 = vsub.f32 %v1445, %v1454
    %v1457 = vmul.f32 %v1455, 1.442695
    %v1458 = vpow.pop %v1457
    %v1459 = vmul.f32 %v1456, 1.442695
    %v1460 = vpow.pop %v1459
    %v1461 = vsel %vm1448, %v1458, 0.0
    %1462 = vadd.xlane.f32.xlu0 %v1461
    %v1463 = vpop.xlane.xlu0 %1462
    %v1464 = vsel %vm1448, %v1460, 0.0
    %1465 = vadd.xlane.f32.xlu0 %v1464
    %v1466 = vpop.xlane.xlu0 %1465
    %v1467 = vrcp.pop %v1463
    %v1468 = vrcp.pop %v1466
    %v1469 = vmul.f32 %v1458, %v1467
    %v1470 = vmul.f32 %v1460, %v1468
    %vm1471 = vcmask 64512
    %v1473 = vsel %vm1471, %v1469, 0
    %1475 = vmatprep.subr.mxu0 0.0
    %1476 = vmatpush1.msra.mxu0 %v1257
    %1477 = vmatprep.subr.mxu0 0.0
    %1478 = vmatpush1.msra.mxu0 0.0
    %1479 = vmatprep.subr.mxu0 0.0
    %1480 = vmatpush1.msra.mxu0 0.0
    %1481 = vmatprep.subr.mxu0 0.0
    %1482 = vmatpush1.msra.mxu0 0.0
    %1483 = vmatprep.subr.mxu0 0.0
    %1484 = vmatpush1.msra.mxu0 0.0
    %1485 = vmatprep.subr.mxu0 0.0
    %1486 = vmatpush1.msra.mxu0 0.0
    %1487 = vmatprep.subr.mxu0 0.0
    %1488 = vmatpush1.msra.mxu0 0.0
    %1489 = vmatprep.subr.mxu0 0.0
    %1490 = vmatpush1.msra.mxu0 0.0
    %1491 = vmatprep.subr.mxu0 0.0
    %1492 = vmatpush1.msra.mxu0 0.0
    %1493 = vmatprep.subr.mxu0 0.0
    %1494 = vmatpush1.msra.mxu0 0.0
    %1495 = vmatprep.subr.mxu0 0.0
    %1496 = vmatpush1.msra.mxu0 0.0
    %1497 = vmatprep.subr.mxu0 0.0
    %1498 = vmatpush1.msra.mxu0 0.0
    %1499 = vmatprep.subr.mxu0 0.0
    %1500 = vmatpush1.msra.mxu0 0.0
    %1501 = vmatprep.subr.mxu0 0.0
    %1502 = vmatpush1.msra.mxu0 0.0
    %1503 = vmatprep.subr.mxu0 0.0
    %1504 = vmatpush1.msra.mxu0 0.0
    %1505 = vmatprep.subr.mxu0 0.0
    %1506 = vmatpush1.msra.mxu0 0.0
    %1507 = vmatprep.subr.mxu0 0.0
    %1508 = vmatpush1.msra.mxu0 0.0
    %1509 = vmatprep.subr.mxu0 0.0
    %1510 = vmatpush1.msra.mxu0 0.0
    %1511 = vmatprep.subr.mxu0 0.0
    %1512 = vmatpush1.msra.mxu0 0.0
    %1513 = vmatprep.subr.mxu0 0.0
    %1514 = vmatpush1.msra.mxu0 0.0
    %1515 = vmatprep.subr.mxu0 0.0
    %1516 = vmatpush1.msra.mxu0 0.0
    %1517 = vmatprep.subr.mxu0 0.0
    %1518 = vmatpush1.msra.mxu0 0.0
    %1519 = vmatprep.subr.mxu0 0.0
    %1520 = vmatpush1.msra.mxu0 0.0
    %1521 = vmatprep.subr.mxu0 0.0
    %1522 = vmatpush1.msra.mxu0 0.0
    %1523 = vmatprep.subr.mxu0 0.0
    %1524 = vmatpush1.msra.mxu0 0.0
    %1525 = vmatprep.subr.mxu0 0.0
    %1526 = vmatpush1.msra.mxu0 0.0
    %1527 = vmatprep.subr.mxu0 0.0
    %1528 = vmatpush1.msra.mxu0 0.0
    %1529 = vmatprep.subr.mxu0 0.0
    %1530 = vmatpush1.msra.mxu0 0.0
    %1531 = vmatprep.subr.mxu0 0.0
    %1532 = vmatpush1.msra.mxu0 0.0
    %1533 = vmatprep.subr.mxu0 0.0
    %1534 = vmatpush1.msra.mxu0 0.0
    %1535 = vmatprep.subr.mxu0 0.0
    %1536 = vmatpush1.msra.mxu0 0.0
    %1537 = vmatprep.subr.mxu0 0.0
    %1538 = vmatpush1.msra.mxu0 0.0
    %1539 = vmatprep.mubr.f32.mxu0 0.0
    %1540 = vmatmul.mubr.f32.gmra.mrb[0].mxu0 %v1473
    %v1541 = vpop.f32.mrb[0].mxu0
    %v1542 = vadd.f32 0.0, %v1541
    %v1543 = vpop.f32.mrb[0].mxu0
    %1544 = vdwg.mxu0
    %v1546 = vsel %vm1471, %v1470, 0
    %1548 = vmatprep.subr.mxu0 0.0
    %1549 = vmatpush1.msra.mxu0 %v1258
    %1550 = vmatprep.subr.mxu0 0.0
    %1551 = vmatpush1.msra.mxu0 0.0
    %1552 = vmatprep.subr.mxu0 0.0
    %1553 = vmatpush1.msra.mxu0 0.0
    %1554 = vmatprep.subr.mxu0 0.0
    %1555 = vmatpush1.msra.mxu0 0.0
    %1556 = vmatprep.subr.mxu0 0.0
    %1557 = vmatpush1.msra.mxu0 0.0
    %1558 = vmatprep.subr.mxu0 0.0
    %1559 = vmatpush1.msra.mxu0 0.0
    %1560 = vmatprep.subr.mxu0 0.0
    %1561 = vmatpush1.msra.mxu0 0.0
    %1562 = vmatprep.subr.mxu0 0.0
    %1563 = vmatpush1.msra.mxu0 0.0
    %1564 = vmatprep.subr.mxu0 0.0
    %1565 = vmatpush1.msra.mxu0 0.0
    %1566 = vmatprep.subr.mxu0 0.0
    %1567 = vmatpush1.msra.mxu0 0.0
    %1568 = vmatprep.subr.mxu0 0.0
    %1569 = vmatpush1.msra.mxu0 0.0
    %1570 = vmatprep.subr.mxu0 0.0
    %1571 = vmatpush1.msra.mxu0 0.0
    %1572 = vmatprep.subr.mxu0 0.0
    %1573 = vmatpush1.msra.mxu0 0.0
    %1574 = vmatprep.subr.mxu0 0.0
    %1575 = vmatpush1.msra.mxu0 0.0
    %1576 = vmatprep.subr.mxu0 0.0
    %1577 = vmatpush1.msra.mxu0 0.0
    %1578 = vmatprep.subr.mxu0 0.0
    %1579 = vmatpush1.msra.mxu0 0.0
    %1580 = vmatprep.subr.mxu0 0.0
    %1581 = vmatpush1.msra.mxu0 0.0
    %1582 = vmatprep.subr.mxu0 0.0
    %1583 = vmatpush1.msra.mxu0 0.0
    %1584 = vmatprep.subr.mxu0 0.0
    %1585 = vmatpush1.msra.mxu0 0.0
    %1586 = vmatprep.subr.mxu0 0.0
    %1587 = vmatpush1.msra.mxu0 0.0
    %1588 = vmatprep.subr.mxu0 0.0
    %1589 = vmatpush1.msra.mxu0 0.0
    %1590 = vmatprep.subr.mxu0 0.0
    %1591 = vmatpush1.msra.mxu0 0.0
    %1592 = vmatprep.subr.mxu0 0.0
    %1593 = vmatpush1.msra.mxu0 0.0
    %1594 = vmatprep.subr.mxu0 0.0
    %1595 = vmatpush1.msra.mxu0 0.0
    %1596 = vmatprep.subr.mxu0 0.0
    %1597 = vmatpush1.msra.mxu0 0.0
    %1598 = vmatprep.subr.mxu0 0.0
    %1599 = vmatpush1.msra.mxu0 0.0
    %1600 = vmatprep.subr.mxu0 0.0
    %1601 = vmatpush1.msra.mxu0 0.0
    %1602 = vmatprep.subr.mxu0 0.0
    %1603 = vmatpush1.msra.mxu0 0.0
    %1604 = vmatprep.subr.mxu0 0.0
    %1605 = vmatpush1.msra.mxu0 0.0
    %1606 = vmatprep.subr.mxu0 0.0
    %1607 = vmatpush1.msra.mxu0 0.0
    %1608 = vmatprep.subr.mxu0 0.0
    %1609 = vmatpush1.msra.mxu0 0.0
    %1610 = vmatprep.subr.mxu0 0.0
    %1611 = vmatpush1.msra.mxu0 0.0
    %1612 = vmatprep.mubr.f32.mxu0 0.0
    %1613 = vmatmul.mubr.f32.gmra.mrb[0].mxu0 %v1546
    %v1614 = vpop.f32.mrb[0].mxu0
    %v1615 = vadd.f32 0.0, %v1614
    %v1616 = vpop.f32.mrb[0].mxu0
    %1617 = vdwg.mxu0
    %v1618 = vmul.f32 %v1542, %v917
    %v1619 = vmul.f32 %v1615, %v917
    %v1620 = vsel %vm921, %v1618, 0.0
    %v1621 = vrot.slane %v1620, 4
    %v1622 = vadd.f32 %v1620, %v1621
    %v1623 = vrot.slane %v1622, 2
    %v1624 = vadd.f32 %v1622, %v1623
    %v1625 = vrot.slane %v1624, 1
    %v1626 = vadd.f32 %v1624, %v1625
    %v1627 = vsel %vm921, %v1619, 0.0
    %v1628 = vrot.slane %v1627, 4
    %v1629 = vadd.f32 %v1627, %v1628
    %v1630 = vrot.slane %v1629, 2
    %v1631 = vadd.f32 %v1629, %v1630
    %v1632 = vrot.slane %v1631, 1
    %v1633 = vadd.f32 %v1631, %v1632
    %v1634 = vpack.c.bf16 %v1626, %v1626
    %v1635 = vpack.c.bf16 %v1633, %v1633
    %v1638 = vunpack.c.l.b16 %v1634
    %v1639 = vunpack.c.l.b16 %v1635
    %v1640 = vsel %vm295, %v1639, %v1638
    %v1641 = vpack.c.b16 %v1640, %v1640
    %1642 = vrot.lane.b32.xlu0 %v952, 64
    %v1643 = vpop.permute.xlu0 %1642
    %1644 = vrot.lane.b32.xlu0 %v953, 64
    %v1645 = vpop.permute.xlu0 %1644
    %v1649 = vsel %vm310, %v1641, 0
    %1651 = vmatprep.subr.bf16.mxu0 0
    %1652 = vmatpush1.bf16.msra.mxu0 %v1643
    %1653 = vmatprep.subr.bf16.mxu0 0
    %1654 = vmatpush1.bf16.msra.mxu0 %v1645
    %1655 = vmatprep.subr.bf16.mxu0 0
    %1656 = vmatpush1.bf16.msra.mxu0 0
    %1657 = vmatprep.subr.bf16.mxu0 0
    %1658 = vmatpush1.bf16.msra.mxu0 0
    %1659 = vmatprep.subr.bf16.mxu0 0
    %1660 = vmatpush1.bf16.msra.mxu0 0
    %1661 = vmatprep.subr.bf16.mxu0 0
    %1662 = vmatpush1.bf16.msra.mxu0 0
    %1663 = vmatprep.subr.bf16.mxu0 0
    %1664 = vmatpush1.bf16.msra.mxu0 0
    %1665 = vmatprep.subr.bf16.mxu0 0
    %1666 = vmatpush1.bf16.msra.mxu0 0
    %1667 = vmatprep.subr.bf16.mxu0 0
    %1668 = vmatpush1.bf16.msra.mxu0 0
    %1669 = vmatprep.subr.bf16.mxu0 0
    %1670 = vmatpush1.bf16.msra.mxu0 0
    %1671 = vmatprep.subr.bf16.mxu0 0
    %1672 = vmatpush1.bf16.msra.mxu0 0
    %1673 = vmatprep.subr.bf16.mxu0 0
    %1674 = vmatpush1.bf16.msra.mxu0 0
    %1675 = vmatprep.subr.bf16.mxu0 0
    %1676 = vmatpush1.bf16.msra.mxu0 0
    %1677 = vmatprep.subr.bf16.mxu0 0
    %1678 = vmatpush1.bf16.msra.mxu0 0
    %1679 = vmatprep.subr.bf16.mxu0 0
    %1680 = vmatpush1.bf16.msra.mxu0 0
    %1681 = vmatprep.subr.bf16.mxu0 0
    %1682 = vmatpush1.bf16.msra.mxu0 0
    %1683 = vmatprep.mubr.bf16.mxu0 0
    %1684 = vmatmul.mubr.bf16.gmra.mrb[0].mxu0 %v1649
    %v1685 = vpop.f32.mrb[0].mxu0
    %v1686 = vadd.f32 0.0, %v1685
    %v1687 = vpop.f32.mrb[0].mxu0
    %v1688 = vpop.f32.mrb[0].mxu0
    %v1689 = vpop.f32.mrb[0].mxu0
    %1690 = vdwg.mxu0
    %v1693 = vunpack.c.l.s4 1966171168
    %v1694 = vunpack.c.0.s8 %v1693
    %v1695 = vlaneseq
    %v1696 = vshrl.u32 %v1695, 7
    %v1697 = vsub.s32 %v1694, %v1696
    %v1698 = vrot.slane %v1686, %v1697
    %v1699 = vcombine.high %v1698, %v1698
    %v1701 = vunpack.c.l.s4 1966171168
    %v1702 = vunpack.c.0.s8 %v1701
    %v1703 = vlaneseq
    %v1704 = vshrl.u32 %v1703, 7
    %v1705 = vsub.s32 %v1702, %v1704
    %v1706 = vrot.slane %v1698, %v1705
    %v1708 = vunpack.c.l.s4 1966171168
    %v1709 = vunpack.c.0.s8 %v1708
    %v1710 = vlaneseq
    %v1711 = vshrl.u32 %v1710, 7
    %v1712 = vsub.s32 %v1709, %v1711
    %v1713 = vrot.slane %v1699, %v1712
    %v1716 = vadd.f32 %v1055, %v1706
    %v1717 = vadd.f32 %v1056, %v1713
    %v1718 = vlaneseq
    %v1719 = vshrl.u32 %v1718, 7
    %v1720 = vsub.s32 0, %v1719
    %v1721 = vrot.slane %v146, %v1720
    %v1724 = vunpack.c.l.s4 1966171168
    %v1725 = vunpack.c.0.s8 %v1724
    %v1726 = vlaneseq
    %v1727 = vshrl.u32 %v1726, 7
    %v1728 = vsub.s32 %v1725, %v1727
    %v1729 = vrot.slane %v1721, %v1728
    %v1730 = vcombine.high %v1729, %v1729
    %v1732 = vunpack.c.l.s4 1966171168
    %v1733 = vunpack.c.0.s8 %v1732
    %v1734 = vlaneseq
    %v1735 = vshrl.u32 %v1734, 7
    %v1736 = vsub.s32 %v1733, %v1735
    %v1737 = vrot.slane %v1729, %v1736
    %v1739 = vunpack.c.l.s4 1966171168
    %v1740 = vunpack.c.0.s8 %v1739
    %v1741 = vlaneseq
    %v1742 = vshrl.u32 %v1741, 7
    %v1743 = vsub.s32 %v1740, %v1742
    %v1744 = vrot.slane %v1730, %v1743
    %v1747 = vadd.f32 %v1716, %v1737
    %v1748 = vadd.f32 %v1717, %v1744
    %v1751 = vcombine.low %v1747, %v1748
    %v1753 = vunpack.c.l.s4 1966171168
    %v1754 = vunpack.c.0.s8 %v1753
    %v1755 = vlaneseq
    %v1756 = vshrl.u32 %v1755, 7
    %v1757 = vsub.s32 %v1754, %v1756
    %v1758 = vrot.slane %v1751, %v1757
    %v1760 = vunpack.c.l.s4 1966171168
    %v1761 = vunpack.c.0.s8 %v1760
    %v1762 = vlaneseq
    %v1763 = vshrl.u32 %v1762, 7
    %v1764 = vsub.s32 %v1761, %v1763
    %v1765 = vrot.slane %v1758, %v1764
    %v1767 = vsel %vm168, %v1765, 0.0
    %1768 = vadd.xlane.f32.xlu0 %v1767
    %v1769 = vpop.xlane.xlu0 %1768
    %v1770 = vmul.f32 %v1769, %v172
    %v1772 = vlaneseq
    %v1773 = vshrl.u32 %v1772, 7
    %v1774 = vsub.s32 0, %v1773
    %v1775 = vrot.slane %v1770, %v1774
    %v1776 = vlaneseq
    %v1777 = vshrl.u32 %v1776, 7
    %v1778 = vsub.s32 1, %v1777
    %v1779 = vrot.slane %v1770, %v1778
    %v1782 = vsub.f32 %v1747, %v1775
    %v1783 = vsub.f32 %v1748, %v1779
    %v1784 = vmul.f32 %v1782, %v1782
    %v1785 = vmul.f32 %v1783, %v1783
    %v1788 = vcombine.low %v1784, %v1785
    %v1790 = vunpack.c.l.s4 1966171168
    %v1791 = vunpack.c.0.s8 %v1790
    %v1792 = vlaneseq
    %v1793 = vshrl.u32 %v1792, 7
    %v1794 = vsub.s32 %v1791, %v1793
    %v1795 = vrot.slane %v1788, %v1794
    %v1797 = vunpack.c.l.s4 1966171168
    %v1798 = vunpack.c.0.s8 %v1797
    %v1799 = vlaneseq
    %v1800 = vshrl.u32 %v1799, 7
    %v1801 = vsub.s32 %v1798, %v1800
    %v1802 = vrot.slane %v1795, %v1801
    %v1804 = vsel %vm168, %v1802, 0.0
    %1805 = vadd.xlane.f32.xlu0 %v1804
    %v1806 = vpop.xlane.xlu0 %1805
    %v1807 = vmul.f32 %v1806, %v172
    %v1808 = vadd.f32 %v1807, 1e-05
    %v1809 = vrsqrt.pop %v1808
    %v1811 = vlaneseq
    %v1812 = vshrl.u32 %v1811, 7
    %v1813 = vsub.s32 0, %v1812
    %v1814 = vrot.slane %v1809, %v1813
    %v1815 = vlaneseq
    %v1816 = vshrl.u32 %v1815, 7
    %v1817 = vsub.s32 1, %v1816
    %v1818 = vrot.slane %v1809, %v1817
    %v1821 = vmul.f32 %v1782, %v1814
    %v1822 = vmul.f32 %v1783, %v1818
    %v1823 = vlaneseq
    %v1824 = vshrl.u32 %v1823, 7
    %v1825 = vsub.s32 1, %v1824
    %v1826 = vrot.slane %v146, %v1825
    %v1829 = vunpack.c.l.s4 1966171168
    %v1830 = vunpack.c.0.s8 %v1829
    %v1831 = vlaneseq
    %v1832 = vshrl.u32 %v1831, 7
    %v1833 = vsub.s32 %v1830, %v1832
    %v1834 = vrot.slane %v1826, %v1833
    %v1835 = vcombine.high %v1834, %v1834
    %v1837 = vunpack.c.l.s4 1966171168
    %v1838 = vunpack.c.0.s8 %v1837
    %v1839 = vlaneseq
    %v1840 = vshrl.u32 %v1839, 7
    %v1841 = vsub.s32 %v1838, %v1840
    %v1842 = vrot.slane %v1834, %v1841
    %v1844 = vunpack.c.l.s4 1966171168
    %v1845 = vunpack.c.0.s8 %v1844
    %v1846 = vlaneseq
    %v1847 = vshrl.u32 %v1846, 7
    %v1848 = vsub.s32 %v1845, %v1847
    %v1849 = vrot.slane %v1835, %v1848
    %v1852 = vmul.f32 %v1821, %v1842
    %v1853 = vmul.f32 %v1822, %v1849
    %v1854 = vlaneseq
    %v1855 = vshrl.u32 %v1854, 7
    %v1856 = vsub.s32 2, %v1855
    %v1857 = vrot.slane %v146, %v1856
    %v1860 = vunpack.c.l.s4 1966171168
    %v1861 = vunpack.c.0.s8 %v1860
    %v1862 = vlaneseq
    %v1863 = vshrl.u32 %v1862, 7
    %v1864 = vsub.s32 %v1861, %v1863
    %v1865 = vrot.slane %v1857, %v1864
    %v1866 = vcombine.high %v1865, %v1865
    %v1868 = vunpack.c.l.s4 1966171168
    %v1869 = vunpack.c.0.s8 %v1868
    %v1870 = vlaneseq
    %v1871 = vshrl.u32 %v1870, 7
    %v1872 = vsub.s32 %v1869, %v1871
    %v1873 = vrot.slane %v1865, %v1872
    %v1875 = vunpack.c.l.s4 1966171168
    %v1876 = vunpack.c.0.s8 %v1875
    %v1877 = vlaneseq
    %v1878 = vshrl.u32 %v1877, 7
    %v1879 = vsub.s32 %v1876, %v1878
    %v1880 = vrot.slane %v1866, %v1879
    %v1883 = vadd.f32 %v1852, %v1873
    %v1884 = vadd.f32 %v1853, %v1880
    %v1885 = vpack.c.bf16 %v1883, %v1883
    %v1886 = vpack.c.bf16 %v1884, %v1884
    %v1887 = vlaneseq
    %v1888 = vshrl.u32 %v1887, 7
    %v1889 = vsub.s32 0, %v1888
    %v1890 = vrot.slane %v147, %v1889
    %v1893 = vunpack.c.l.b16 %v1885
    %v1894 = vunpack.c.l.b16 %v1886
    %v1895 = vrot.slane %v1894, 7
    %v1896 = vsel %vm295, %v1895, %v1893
    %v1897 = vpack.c.b16 %v1896, %v1896
    %v1902 = vunpack.c.l.b16 %v121
    %v1903 = vunpack.c.l.b16 %v122
    %v1904 = vunpack.c.l.b16 %v123
    %v1905 = vunpack.c.l.b16 %v124
    %v1906 = vpack.c.b16 %v1903, %v1902
    %v1907 = vpack.c.b16 %v1905, %v1904
    %v1911 = vsel %vm310, %v1897, 0
    %1913 = vmatprep.subr.bf16.mxu0 0
    %1914 = vmatpush1.bf16.msra.mxu0 %v1906
    %1915 = vmatprep.subr.bf16.mxu0 0
    %1916 = vmatpush1.bf16.msra.mxu0 %v1907
    %1917 = vmatprep.subr.bf16.mxu0 0
    %1918 = vmatpush1.bf16.msra.mxu0 0
    %1919 = vmatprep.subr.bf16.mxu0 0
    %1920 = vmatpush1.bf16.msra.mxu0 0
    %1921 = vmatprep.subr.bf16.mxu0 0
    %1922 = vmatpush1.bf16.msra.mxu0 0
    %1923 = vmatprep.subr.bf16.mxu0 0
    %1924 = vmatpush1.bf16.msra.mxu0 0
    %1925 = vmatprep.subr.bf16.mxu0 0
    %1926 = vmatpush1.bf16.msra.mxu0 0
    %1927 = vmatprep.subr.bf16.mxu0 0
    %1928 = vmatpush1.bf16.msra.mxu0 0
    %1929 = vmatprep.subr.bf16.mxu0 0
    %1930 = vmatpush1.bf16.msra.mxu0 0
    %1931 = vmatprep.subr.bf16.mxu0 0
    %1932 = vmatpush1.bf16.msra.mxu0 0
    %1933 = vmatprep.subr.bf16.mxu0 0
    %1934 = vmatpush1.bf16.msra.mxu0 0
    %1935 = vmatprep.subr.bf16.mxu0 0
    %1936 = vmatpush1.bf16.msra.mxu0 0
    %1937 = vmatprep.subr.bf16.mxu0 0
    %1938 = vmatpush1.bf16.msra.mxu0 0
    %1939 = vmatprep.subr.bf16.mxu0 0
    %1940 = vmatpush1.bf16.msra.mxu0 0
    %1941 = vmatprep.subr.bf16.mxu0 0
    %1942 = vmatpush1.bf16.msra.mxu0 0
    %1943 = vmatprep.subr.bf16.mxu0 0
    %1944 = vmatpush1.bf16.msra.mxu0 0
    %1945 = vmatprep.mubr.bf16.mxu0 0
    %1946 = vmatmul.mubr.bf16.gmra.mrb[0].mxu0 %v1911
    %v1947 = vpop.f32.mrb[0].mxu0
    %v1948 = vadd.f32 %v1890, %v1947
    %v1949 = vpop.f32.mrb[0].mxu0
    %v1950 = vpop.f32.mrb[0].mxu0
    %v1951 = vpop.f32.mrb[0].mxu0
    %1952 = vdwg.mxu0
    %v1953 = vmul.f32 %v1948, 0.5
    %v1954 = vmul.f32 %v1948, 0.70710677
    %v1955 = verf.f32.pop %v1954
    %v1956 = vadd.f32 %v1955, 1.0
    %v1957 = vmul.f32 %v1953, %v1956
    %v1958 = vpack.c.bf16 %v1957, %v1957
    %v1975 = vunpack.c.l.b16 %v129
    %v1976 = vunpack.c.l.b16 %v130
    %v1977 = vunpack.c.l.b16 %v131
    %v1978 = vunpack.c.l.b16 %v132
    %v1979 = vunpack.c.l.b16 %v133
    %v1980 = vunpack.c.l.b16 %v134
    %v1981 = vunpack.c.l.b16 %v135
    %v1982 = vunpack.c.l.b16 %v136
    %v1983 = vunpack.c.l.b16 %v137
    %v1984 = vunpack.c.l.b16 %v138
    %v1985 = vunpack.c.l.b16 %v139
    %v1986 = vunpack.c.l.b16 %v140
    %v1987 = vunpack.c.l.b16 %v141
    %v1988 = vunpack.c.l.b16 %v142
    %v1989 = vunpack.c.l.b16 %v143
    %v1990 = vunpack.c.l.b16 %v144
    %v1991 = vpack.c.b16 %v1976, %v1975
    %v1992 = vpack.c.b16 %v1978, %v1977
    %v1993 = vpack.c.b16 %v1980, %v1979
    %v1994 = vpack.c.b16 %v1982, %v1981
    %v1995 = vpack.c.b16 %v1984, %v1983
    %v1996 = vpack.c.b16 %v1986, %v1985
    %v1997 = vpack.c.b16 %v1988, %v1987
    %v1998 = vpack.c.b16 %v1990, %v1989
    %2007 = vmatprep.subr.bf16.mxu0 0
    %2008 = vmatpush1.bf16.msra.mxu0 %v1991
    %2009 = vmatprep.subr.bf16.mxu0 0
    %2010 = vmatpush1.bf16.msra.mxu0 %v1992
    %2011 = vmatprep.subr.bf16.mxu0 0
    %2012 = vmatpush1.bf16.msra.mxu0 %v1993
    %2013 = vmatprep.subr.bf16.mxu0 0
    %2014 = vmatpush1.bf16.msra.mxu0 %v1994
    %2015 = vmatprep.subr.bf16.mxu0 0
    %2016 = vmatpush1.bf16.msra.mxu0 %v1995
    %2017 = vmatprep.subr.bf16.mxu0 0
    %2018 = vmatpush1.bf16.msra.mxu0 %v1996
    %2019 = vmatprep.subr.bf16.mxu0 0
    %2020 = vmatpush1.bf16.msra.mxu0 %v1997
    %2021 = vmatprep.subr.bf16.mxu0 0
    %2022 = vmatpush1.bf16.msra.mxu0 %v1998
    %2023 = vmatprep.subr.bf16.mxu0 0
    %2024 = vmatpush1.bf16.msra.mxu0 0
    %2025 = vmatprep.subr.bf16.mxu0 0
    %2026 = vmatpush1.bf16.msra.mxu0 0
    %2027 = vmatprep.subr.bf16.mxu0 0
    %2028 = vmatpush1.bf16.msra.mxu0 0
    %2029 = vmatprep.subr.bf16.mxu0 0
    %2030 = vmatpush1.bf16.msra.mxu0 0
    %2031 = vmatprep.subr.bf16.mxu0 0
    %2032 = vmatpush1.bf16.msra.mxu0 0
    %2033 = vmatprep.subr.bf16.mxu0 0
    %2034 = vmatpush1.bf16.msra.mxu0 0
    %2035 = vmatprep.subr.bf16.mxu0 0
    %2036 = vmatpush1.bf16.msra.mxu0 0
    %2037 = vmatprep.subr.bf16.mxu0 0
    %2038 = vmatpush1.bf16.msra.mxu0 0
    %2039 = vmatprep.mubr.bf16.mxu0 0
    %2040 = vmatmul.mubr.bf16.gmra.mrb[0].mxu0 %v1958
    %v2041 = vpop.f32.mrb[0].mxu0
    %v2042 = vadd.f32 0.0, %v2041
    %v2043 = vpop.f32.mrb[0].mxu0
    %v2044 = vpop.f32.mrb[0].mxu0
    %v2045 = vpop.f32.mrb[0].mxu0
    %2046 = vdwg.mxu0
    %v2049 = vunpack.c.l.s4 1966171168
    %v2050 = vunpack.c.0.s8 %v2049
    %v2051 = vlaneseq
    %v2052 = vshrl.u32 %v2051, 7
    %v2053 = vsub.s32 %v2050, %v2052
    %v2054 = vrot.slane %v2042, %v2053
    %v2055 = vcombine.high %v2054, %v2054
    %v2057 = vunpack.c.l.s4 1966171168
    %v2058 = vunpack.c.0.s8 %v2057
    %v2059 = vlaneseq
    %v2060 = vshrl.u32 %v2059, 7
    %v2061 = vsub.s32 %v2058, %v2060
    %v2062 = vrot.slane %v2054, %v2061
    %v2064 = vunpack.c.l.s4 1966171168
    %v2065 = vunpack.c.0.s8 %v2064
    %v2066 = vlaneseq
    %v2067 = vshrl.u32 %v2066, 7
    %v2068 = vsub.s32 %v2065, %v2067
    %v2069 = vrot.slane %v2055, %v2068
    %v2072 = vadd.f32 %v1747, %v2062
    %v2073 = vadd.f32 %v1748, %v2069
    %v2074 = vlaneseq
    %v2075 = vshrl.u32 %v2074, 7
    %v2076 = vsub.s32 3, %v2075
    %v2077 = vrot.slane %v146, %v2076
    %v2080 = vunpack.c.l.s4 1966171168
    %v2081 = vunpack.c.0.s8 %v2080
    %v2082 = vlaneseq
    %v2083 = vshrl.u32 %v2082, 7
    %v2084 = vsub.s32 %v2081, %v2083
    %v2085 = vrot.slane %v2077, %v2084
    %v2086 = vcombine.high %v2085, %v2085
    %v2088 = vunpack.c.l.s4 1966171168
    %v2089 = vunpack.c.0.s8 %v2088
    %v2090 = vlaneseq
    %v2091 = vshrl.u32 %v2090, 7
    %v2092 = vsub.s32 %v2089, %v2091
    %v2093 = vrot.slane %v2085, %v2092
    %v2095 = vunpack.c.l.s4 1966171168
    %v2096 = vunpack.c.0.s8 %v2095
    %v2097 = vlaneseq
    %v2098 = vshrl.u32 %v2097, 7
    %v2099 = vsub.s32 %v2096, %v2098
    %v2100 = vrot.slane %v2086, %v2099
    %v2103 = vadd.f32 %v2072, %v2093
    %v2104 = vadd.f32 %v2073, %v2100
    %vm2105 = vcmask 253952
    %2106 = vst.msk [vmem:[#allocation13] sm:$0x1] %vm2105, %v2103
    %2107 = vst.msk [vmem:[#allocation13 + $0x1] sm:$0x1] %vm2105, %v2104
    // Predicated region
    $region58: #{residual_attention_block.1} parent=1 // pred_check
      _
    $region59: #{residual_attention_block.1} parent=1 // pred_check_branch
      %2109 = sbr.rel (0) target = $region61
    $region60: #{residual_attention_block.1} parent=1 // pred_region
      %s2111 = ssub.s32 32, 32
      %2112 = vsyncadd [#allocation4], %s2111
      %s2113 = sshll.u32 [#allocation13], 4
      %s2114 = int_to_ptr.vmem [resolvable:$true] %s2113
      %2119 = dma.vmem_to_hbm [thread:$0]  %s2114, 32, %s8, [#allocation4], 16, 16, 1
    $region61: #{residual_attention_block.1} parent=1 // pred_fallthru
      _
    // Predicated region
    $region62: #{residual_attention_block.1} parent=1 // pred_check
      _
    $region63: #{residual_attention_block.1} parent=1 // pred_check_branch
      %2121 = sbr.rel (0) target = $region65
    $region64: #{residual_attention_block.1} parent=1 // pred_region
      %s2123 = ssub.s32 512, 512
      %2124 = vsyncadd [#allocation15], %s2123
      %s2125 = sshll.u32 [#allocation14], 4
      %s2126 = int_to_ptr.vmem [resolvable:$true] %s2125
      %2131 = dma.vmem_to_hbm [thread:$0]  %s2126, 512, %s9, [#allocation15], 128, 128, 8
    $region65: #{residual_attention_block.1} parent=1 // pred_fallthru
      _
    // Predicated region
    $region66: #{residual_attention_block.1} parent=1 // pred_check
      _
    $region67: #{residual_attention_block.1} parent=1 // pred_check_branch
      %2133 = sbr.rel (0) target = $region69
    $region68: #{residual_attention_block.1} parent=1 // pred_region
      %s2135 = ssub.s32 512, 512
      %2136 = vsyncadd [#allocation15], %s2135
      %s2137 = sshll.u32 [#allocation16], 4
      %s2138 = int_to_ptr.vmem [resolvable:$true] %s2137
      %2143 = dma.vmem_to_hbm [thread:$0]  %s2138, 512, %s10, [#allocation15], 128, 128, 8
    $region69: #{residual_attention_block.1} parent=1 // pred_fallthru
      _
    // Predicated region
    $region70: #{residual_attention_block.1} parent=1 // pred_check
      _
    $region71: #{residual_attention_block.1} parent=1 // pred_check_branch
      %2145 = sbr.rel (0) target = $region73
    $region72: #{residual_attention_block.1} parent=1 // pred_region
      %2146 = dma.done [#allocation4], 32
    $region73: #{residual_attention_block.1} parent=1 // pred_fallthru
      _
    // Predicated region
    $region74: #{residual_attention_block.1} parent=1 // pred_check
      _
    $region75: #{residual_attention_block.1} parent=1 // pred_check_branch
      %2148 = sbr.rel (0) target = $region77
    $region76: #{residual_attention_block.1} parent=1 // pred_region
      %2149 = dma.done [#allocation15], 512
    $region77: #{residual_attention_block.1} parent=1 // pred_fallthru
      _
    // Predicated region
    $region78: #{residual_attention_block.1} parent=1 // pred_check
      _
    $region79: #{residual_attention_block.1} parent=1 // pred_check_branch
      %2151 = sbr.rel (0) target = $region81
    $region80: #{residual_attention_block.1} parent=1 // pred_region
      %2152 = dma.done [#allocation15], 512
    $region81: #{residual_attention_block.1} parent=1 // pred_fallthru
      _
    %2153 = vsyncpa [#allocation3], 1
    %2154 = vsyncpa [#allocation6], 1
    %2155 = vsyncpa [#allocation9], 1
    %2156 = vsyncpa [#allocation12], 1
    %2157 = vsyncpa [#allocation4], 1
    %2158 = vsyncpa [#allocation15], 1

</llo_original>
